<compile_context>
chip_gen: v7x
topology: tpu7x:2x2x1
jax: 0.10.0
libtpu: 0.0.40
codegen_flags: <defaults>
</compile_context>

<pallas_src>
import functools

import jax
import jax.numpy as jnp
from jax import lax
from jax.experimental import pallas as pl
from jax.experimental.pallas import tpu as pltpu


def _build_index_para(nipsin):
    """index_para buffer from __init__: [0] + [1]*3 + [2]*9 + ..."""
    idx = [0]
    for i in range(1, nipsin):
        idx.extend([i] * (3 ** i))
    return idx


# --------------------------------------------------------------------------- #
# Pallas kernel: one pair block per step. Gaussian radial part at nwave width,
# lane-tiled to nfeat, multiplied by the replicated angular*Cij prefactor and
# scatter-added onto center atoms with a canonical one-hot MXU matmul.
# Output block (atoms_pad, nfeat) is resident across the pair axis.
# --------------------------------------------------------------------------- #
def _meam_density3_kernel(packed_ref, center_ref, rs_ref, ninta_ref, out_ref, *,
                          npara, nwave, natomtype, atoms_pad):
    k = pl.program_id(1)                              # pair-block index (reduction)

    @pl.when(k == 0)
    def _init():
        out_ref[...] = jnp.zeros_like(out_ref)

    nfeat = npara * nwave
    pk = packed_ref[...]                              # (Pb, pack_w) f32, single DMA
    angc_rep = pk[:, 0:nfeat]                         # angular*Cij*valid, lane f=j*W+w -> j
    d = pk[:, nfeat:nfeat + 1]                        # (Pb, 1) pair distance
    sp1h = pk[:, nfeat + 1:nfeat + 1 + natomtype]     # (Pb, T) neighbour-species one-hot

    # rs / (-10*inta) per pair, gathered from the tiny whole-table VMEM blocks
    # via an exact f32 one-hot multiply-accumulate (natomtype is small).
    rs_p = sp1h[:, 0:1] * rs_ref[0:1, :]
    ninta_p = sp1h[:, 0:1] * ninta_ref[0:1, :]
    for t in range(1, natomtype):
        rs_p = rs_p + sp1h[:, t:t + 1] * rs_ref[t:t + 1, :]
        ninta_p = ninta_p + sp1h[:, t:t + 1] * ninta_ref[t:t + 1, :]

    diff = d - rs_p
    gauss = jnp.exp(ninta_p * diff * diff)            # (Pb, W)  EUP at minimal width

    # lane-tile the gaussian along the feature axis (f -> w = f % W) and apply
    # the wrapper-replicated angular prefactor: one elementwise multiply.
    gauss_rep = jnp.concatenate([gauss] * npara, axis=-1)      # (Pb, F)
    orb = angc_rep * gauss_rep                                  # (Pb, F)

    # scatter-add onto center atoms == canonical (A,K)x(K,F) one-hot matmul.
    # Invalid/padded pairs carry center == atoms_pad -> all-zero one-hot column.
    center = center_ref[...]                          # (1, Pb) int32, lane-major
    rows = lax.broadcasted_iota(jnp.int32, (atoms_pad, center.shape[1]), 0)
    onehot = (rows == center).astype(jnp.float32)     # (A, Pb)

    out_ref[...] += lax.dot_general(
        onehot, orb,
        dimension_numbers=(((1,), (0,)), ((), ())),
        preferred_element_type=jnp.float32)           # (A, F)


# --------------------------------------------------------------------------- #
# Wrapper: index bookkeeping / cheap per-pair prep in plain JAX (XLA-fused),
# hot path in the Pallas kernel, split-reduce + square + l-regroup afterwards.
# --------------------------------------------------------------------------- #
def meam_density3_forward(coordinates, numatoms, atom_index, shifts, species,
                          rs, inta, params, cutoff, nipsin, *,
                          pair_block=512, n_split=2):
    del numatoms                                      # unused by the forward math
    nbatch, numatom, _ = coordinates.shape
    nn = atom_index.shape[-1]
    natomtype, nwave = rs.shape
    totnatom = nbatch * numatom
    index_para = _build_index_para(nipsin)
    npara = len(index_para)
    nfeat = npara * nwave

    # --- pair bookkeeping (mirrors the torch index gymnastics) -------------- #
    ai = jnp.transpose(atom_index, (1, 0, 2)).reshape(2, -1)          # (2, P)
    self_mol = jnp.repeat(jnp.arange(nbatch, dtype=ai.dtype) * numatom, nn)[None, :]
    idx12 = ai + self_mol                                             # global ids
    cflat = coordinates.reshape(-1, 3).astype(jnp.float32)
    sflat = shifts.reshape(-1, 3).astype(jnp.float32)
    valid = jnp.all(sflat > -1e9, axis=1)                             # padding mask
    dvec = jnp.take(cflat, idx12[0], axis=0) - jnp.take(cflat, idx12[1], axis=0) + sflat
    dvec = jnp.where(valid[:, None], dvec, 0.0)
    d = jnp.sqrt(jnp.sum(dvec * dvec, axis=-1))                       # (P,)

    species_i = jnp.take(species, idx12[1], axis=0)   # torch species_  (gaussian / Cij)
    species_j = jnp.take(species, idx12[0], axis=0)   # torch species_j (Cij)

    # angular prefactor per pair: [fcut, fcut*u, fcut*u⊗u, ...]
    safe_d = jnp.where(d > 0, d, 1.0)
    u = dvec / safe_d[:, None]
    fcut = 0.5 * (jnp.cos(jnp.pi * jnp.minimum(d / cutoff, 1.0)) + 1.0)
    ang_parts = [fcut[:, None]]
    prev = fcut[:, None]
    for _ in range(1, nipsin):
        prev = (prev[:, :, None] * u[:, None, :]).reshape(prev.shape[0], -1)
        ang_parts.append(prev)
    ang = jnp.concatenate(ang_parts, axis=1)                          # (P, npara)

    # Cij element weights (params padded with 0 for species == -1); fold validity.
    params_ext = jnp.concatenate([params.astype(jnp.float32),
                                  jnp.zeros((1,), jnp.float32)])
    ci = jnp.take(params_ext, jnp.where(species_i < 0, natomtype, species_i), axis=0)
    cj = jnp.take(params_ext, jnp.where(species_j < 0, natomtype, species_j), axis=0)
    cij = ci * cj * valid.astype(jnp.float32)
    # replicate angular*Cij along the nwave axis: lane f = j*nwave + w -> angc[:, j]
    angc_rep = jnp.repeat(ang * cij[:, None], nwave, axis=1)          # (P, nfeat)

    # neighbour-species one-hot (species < 0 -> all-zero row -> zero orbital)
    spc = jnp.where(species_i >= 0, species_i, natomtype)
    sp1h = (spc[:, None] == jnp.arange(natomtype)[None, :]).astype(jnp.float32)

    # atoms padded to a sublane multiple; invalid pairs target row `atoms_pad`
    # (out of range -> zero one-hot column, independent of the Cij masking).
    atoms_pad = ((totnatom + 7) // 8) * 8
    center = jnp.where(valid, idx12[0], atoms_pad).astype(jnp.int32)  # (P,)

    # --- one packed lane-dense per-pair input block -------------------------- #
    p_total = d.shape[0]
    used = nfeat + 1 + natomtype
    pack_w = ((used + 127) // 128) * 128
    packed = jnp.concatenate(
        [angc_rep, d[:, None], sp1h,
         jnp.zeros((p_total, pack_w - used), jnp.float32)], axis=1)   # (P, pack_w)

    # --- pad pairs so every (split, pair-block) cell is full ----------------- #
    n_blocks = max(pl.cdiv(p_total, pair_block), 1)
    n_kb = pl.cdiv(n_blocks, n_split)                 # pair blocks per core-split
    p_pad_total = n_split * n_kb * pair_block
    ppad = p_pad_total - p_total
    packed = jnp.pad(packed, ((0, ppad), (0, 0)))
    center = jnp.pad(center, ((0, ppad),), constant_values=atoms_pad)[None, :]

    rs_tab = rs.astype(jnp.float32)                   # (natomtype, nwave)
    ninta_tab = (-10.0) * inta.astype(jnp.float32)    # -10 folded into the table

    kernel = functools.partial(_meam_density3_kernel, npara=npara, nwave=nwave,
                               natomtype=natomtype, atoms_pad=atoms_pad)

    part = pl.pallas_call(
        kernel,
        out_shape=jax.ShapeDtypeStruct((n_split * atoms_pad, nfeat), jnp.float32),
        grid_spec=pltpu.PrefetchScalarGridSpec(
            num_scalar_prefetch=0,
            grid=(n_split, n_kb),
            in_specs=[
                pl.BlockSpec((pair_block, pack_w), lambda s, k: (s * n_kb + k, 0)),
                pl.BlockSpec((1, pair_block), lambda s, k: (0, s * n_kb + k)),
                pl.BlockSpec((natomtype, nwave), lambda s, k: (0, 0)),  # rs table
                pl.BlockSpec((natomtype, nwave), lambda s, k: (0, 0)),  # -10*inta table
            ],
            out_specs=pl.BlockSpec((atoms_pad, nfeat), lambda s, k: (s, 0)),
        ),
        compiler_params=pltpu.CompilerParams(
            dimension_semantics=("parallel", "arbitrary")),
    )(packed, center, rs_tab, ninta_tab)

    # --- epilogue: reduce core splits, square, regroup channels by l -------- #
    part = part.reshape(n_split, atoms_pad, nfeat).sum(axis=0)[:totnatom]
    part = jnp.square(part).reshape(totnatom, npara, nwave)  # torch.square(part_density)
    ipara = jnp.asarray(index_para, dtype=jnp.int32)
    dens = jnp.zeros((totnatom, nipsin, nwave), jnp.float32)
    dens = dens.at[:, ipara].add(part)                # density.index_add_(0, index_para, ...)
    return dens.reshape(totnatom, nipsin * nwave)


# --------------------------------------------------------------------------- #
# Pure-JAX reference (faithful transcription of the torch forward, f32).
# --------------------------------------------------------------------------- #
def meam_density3_reference(coordinates, numatoms, atom_index, shifts, species,
                            rs, inta, params, cutoff, nipsin):
    del numatoms
    nbatch, numatom, _ = coordinates.shape
    nn = atom_index.shape[-1]
    natomtype, nwave = rs.shape
    totnatom = nbatch * numatom
    index_para = jnp.asarray(_build_index_para(nipsin), dtype=jnp.int32)

    ai = jnp.transpose(atom_index, (1, 0, 2)).reshape(2, -1)
    self_mol = jnp.repeat(jnp.arange(nbatch, dtype=ai.dtype) * numatom, nn)[None, :]
    idx12 = ai + self_mol
    cflat = coordinates.reshape(-1, 3)
    sflat = shifts.reshape(-1, 3)
    valid = jnp.all(sflat > -1e9, axis=1)
    dvec = cflat[idx12[0]] - cflat[idx12[1]] + sflat
    dvec = jnp.where(valid[:, None], dvec, 0.0)
    d = jnp.linalg.norm(dvec, axis=-1)
    species_i = species[idx12[1]]
    species_j = species[idx12[0]]

    safe_d = jnp.where(d > 0, d, 1.0)
    u = dvec / safe_d[:, None]
    fcut = 0.5 * (jnp.cos(jnp.pi * jnp.minimum(d / cutoff, 1.0)) + 1.0)
    ang_parts = [fcut[:, None]]
    prev = fcut[:, None]
    for _ in range(1, nipsin):
        prev = (prev[:, :, None] * u[:, None, :]).reshape(prev.shape[0], -1)
        ang_parts.append(prev)
    ang = jnp.concatenate(ang_parts, axis=1)                          # (P, npara)

    spc = jnp.where(species_i >= 0, species_i, 0)
    gauss = jnp.exp(-10.0 * inta[spc] * jnp.square(d[:, None] - rs[spc]))

    params_ext = jnp.concatenate([params, jnp.zeros((1,), params.dtype)])
    ci = params_ext[jnp.where(species_i < 0, natomtype, species_i)]
    cj = params_ext[jnp.where(species_j < 0, natomtype, species_j)]
    w = ci * cj * valid.astype(jnp.float32)

    orbital = ang[:, :, None] * gauss[:, None, :] * w[:, None, None]  # (P, npara, W)
    part = jnp.zeros((totnatom, nwave, ang.shape[1]), jnp.float32)
    part = part.at[idx12[0]].add(jnp.transpose(orbital, (0, 2, 1)))
    part = jnp.square(part)
    dens = jnp.zeros((nipsin, totnatom, nwave), jnp.float32)
    dens = dens.at[index_para].add(jnp.transpose(part, (2, 0, 1)))
    return jnp.transpose(dens, (1, 0, 2)).reshape(totnatom, nipsin * nwave)


if __name__ == "__main__":
    key = jax.random.PRNGKey(0)
    nbatch, numatom, neigh = 2, 8, 16
    natomtype, nwave, nipsin = 3, 16, 2
    cutoff = 5.0
    nn = numatom * neigh

    k1, k2, k3, k4, k5, k6, k7, k8 = jax.random.split(key, 8)
    coordinates = jax.random.uniform(k1, (nbatch, numatom, 3), jnp.float32, 0.0, 4.0)
    species = jax.random.randint(k2, (nbatch * numatom,), 0, natomtype, jnp.int32)
    species = species.at[-1].set(-1)                  # exercise the masked (-1) path
    # torch spec: atom_index has shape (2, nbatch, numatom*neigh)
    atom_index = jax.random.randint(k3, (2, nbatch, nn), 0, numatom, jnp.int32)
    small_shift = jax.random.uniform(k4, (nbatch, nn, 3), jnp.float32, -1.0, 1.0)
    valid_mask = jax.random.bernoulli(k5, 0.8, (nbatch, nn, 1))
    shifts = jnp.where(valid_mask, small_shift, jnp.float32(-1e10))   # padded pairs
    numatoms = jnp.full((nbatch, 1), numatom, jnp.int32)

    # deterministic synthetic parameters (shapes from __init__: (natomtype, nwave))
    rs = (jnp.tile(jnp.linspace(0.5, cutoff, nwave, dtype=jnp.float32)[None, :],
                   (natomtype, 1))
          + 0.05 * jax.random.normal(k6, (natomtype, nwave), jnp.float32))
    inta = 0.2 + jax.random.uniform(k7, (natomtype, nwave), jnp.float32, 0.0, 0.8)
    params = jax.random.uniform(k8, (natomtype,), jnp.float32, 0.8, 1.2)

    out = meam_density3_forward(coordinates, numatoms, atom_index, shifts,
                                species, rs, inta, params, cutoff, nipsin)
    out = jax.block_until_ready(out)

    ref = meam_density3_reference(coordinates, numatoms, atom_index, shifts,
                                  species, rs, inta, params, cutoff, nipsin)

    assert out.shape == (nbatch * numatom, nipsin * nwave), out.shape
    max_err = float(jnp.max(jnp.abs(out - ref)))
    assert jnp.allclose(out, ref, rtol=1e-2, atol=1e-2), max_err
    print("KERNEL_OK")
</pallas_src>

<mosaic_0001>
module attributes {stable_mosaic.version = 11 : i64} {
  func.func @_meam_density3_kernel(%arg0: i32, %arg1: i32, %arg2: memref<512x128xf32, #tpu.memory_space<vmem>>, %arg3: memref<1x512xi32, #tpu.memory_space<vmem>>, %arg4: memref<3x16xf32, #tpu.memory_space<vmem>>, %arg5: memref<3x16xf32, #tpu.memory_space<vmem>>, %arg6: memref<16x64xf32, #tpu.memory_space<vmem>>) attributes {dimension_semantics = [#tpu.dimension_semantics<parallel>, #tpu.dimension_semantics<arbitrary>], iteration_bounds = array<i64: 2, 1>, scalar_prefetch = 0 : i64, scratch_operands = 0 : i64, tpu.core_type = #tpu.core_type<tc>, window_params = [{transform_indices = @transform_0, window_bounds = array<i64: 512, 128>}, {transform_indices = @transform_1, window_bounds = array<i64: 1, 512>}, {pipeline_mode = #tpu.pipeline_mode<synchronous>, transform_indices = @transform_2, window_bounds = array<i64: 3, 16>}, {pipeline_mode = #tpu.pipeline_mode<synchronous>, transform_indices = @transform_3, window_bounds = array<i64: 3, 16>}, {transform_indices = @transform_4, window_bounds = array<i64: 16, 64>}]} {
    %c0_i32 = arith.constant 0 : i32
    %0 = arith.cmpi eq, %arg1, %c0_i32 : i32
    %1 = arith.extui %0 : i1 to i32
    %c0_i32_0 = arith.constant 0 : i32
    %2 = arith.cmpi ne, %1, %c0_i32_0 : i32
    scf.if %2 {
      %cst_18 = arith.constant 0.000000e+00 : f32
      %58 = vector.broadcast %cst_18 : f32 to vector<16x64xf32>
      %c0_19 = arith.constant 0 : index
      %c0_20 = arith.constant 0 : index
      %59 = vector.load %arg6[%c0_19, %c0_20] : memref<16x64xf32, #tpu.memory_space<vmem>>, vector<16x64xf32>
      tpu.vector_store %arg6[%c0_19, %c0_20], %58 {strides = array<i32>} : memref<16x64xf32, #tpu.memory_space<vmem>>, vector<16x64xf32>,
    } else {
    }
    %c0 = arith.constant 0 : index
    %c0_1 = arith.constant 0 : index
    %3 = vector.load %arg2[%c0, %c0_1] : memref<512x128xf32, #tpu.memory_space<vmem>>, vector<512x128xf32>
    %4 = vector.extract_strided_slice %3 {offsets = [0, 0], sizes = [512, 64], strides = [1, 1]} : vector<512x128xf32> to vector<512x64xf32>
    %5 = vector.extract_strided_slice %3 {offsets = [0, 64], sizes = [512, 1], strides = [1, 1]} : vector<512x128xf32> to vector<512x1xf32>
    %6 = vector.extract_strided_slice %3 {offsets = [0, 65], sizes = [512, 3], strides = [1, 1]} : vector<512x128xf32> to vector<512x3xf32>
    %7 = vector.extract_strided_slice %6 {offsets = [0, 0], sizes = [512, 1], strides = [1, 1]} : vector<512x3xf32> to vector<512x1xf32>
    %c0_2 = arith.constant 0 : index
    %c0_3 = arith.constant 0 : index
    %8 = vector.load %arg4[%c0_2, %c0_3] : memref<3x16xf32, #tpu.memory_space<vmem>>, vector<1x16xf32>
    %9 = vector.broadcast %7 : vector<512x1xf32> to vector<512x16xf32>
    %10 = vector.broadcast %8 : vector<1x16xf32> to vector<512x16xf32>
    %11 = arith.mulf %9, %10 : vector<512x16xf32>
    %12 = vector.extract_strided_slice %6 {offsets = [0, 0], sizes = [512, 1], strides = [1, 1]} : vector<512x3xf32> to vector<512x1xf32>
    %c0_4 = arith.constant 0 : index
    %c0_5 = arith.constant 0 : index
    %13 = vector.load %arg5[%c0_4, %c0_5] : memref<3x16xf32, #tpu.memory_space<vmem>>, vector<1x16xf32>
    %14 = vector.broadcast %12 : vector<512x1xf32> to vector<512x16xf32>
    %15 = vector.broadcast %13 : vector<1x16xf32> to vector<512x16xf32>
    %16 = arith.mulf %14, %15 : vector<512x16xf32>
    %17 = vector.extract_strided_slice %6 {offsets = [0, 1], sizes = [512, 1], strides = [1, 1]} : vector<512x3xf32> to vector<512x1xf32>
    %c1 = arith.constant 1 : index
    %c0_6 = arith.constant 0 : index
    %18 = vector.load %arg4[%c1, %c0_6] : memref<3x16xf32, #tpu.memory_space<vmem>>, vector<1x16xf32>
    %19 = vector.broadcast %17 : vector<512x1xf32> to vector<512x16xf32>
    %20 = vector.broadcast %18 : vector<1x16xf32> to vector<512x16xf32>
    %21 = arith.mulf %19, %20 : vector<512x16xf32>
    %22 = arith.addf %11, %21 : vector<512x16xf32>
    %23 = vector.extract_strided_slice %6 {offsets = [0, 1], sizes = [512, 1], strides = [1, 1]} : vector<512x3xf32> to vector<512x1xf32>
    %c1_7 = arith.constant 1 : index
    %c0_8 = arith.constant 0 : index
    %24 = vector.load %arg5[%c1_7, %c0_8] : memref<3x16xf32, #tpu.memory_space<vmem>>, vector<1x16xf32>
    %25 = vector.broadcast %23 : vector<512x1xf32> to vector<512x16xf32>
    %26 = vector.broadcast %24 : vector<1x16xf32> to vector<512x16xf32>
    %27 = arith.mulf %25, %26 : vector<512x16xf32>
    %28 = arith.addf %16, %27 : vector<512x16xf32>
    %29 = vector.extract_strided_slice %6 {offsets = [0, 2], sizes = [512, 1], strides = [1, 1]} : vector<512x3xf32> to vector<512x1xf32>
    %c2 = arith.constant 2 : index
    %c0_9 = arith.constant 0 : index
    %30 = vector.load %arg4[%c2, %c0_9] : memref<3x16xf32, #tpu.memory_space<vmem>>, vector<1x16xf32>
    %31 = vector.broadcast %29 : vector<512x1xf32> to vector<512x16xf32>
    %32 = vector.broadcast %30 : vector<1x16xf32> to vector<512x16xf32>
    %33 = arith.mulf %31, %32 : vector<512x16xf32>
    %34 = arith.addf %22, %33 : vector<512x16xf32>
    %35 = vector.extract_strided_slice %6 {offsets = [0, 2], sizes = [512, 1], strides = [1, 1]} : vector<512x3xf32> to vector<512x1xf32>
    %c2_10 = arith.constant 2 : index
    %c0_11 = arith.constant 0 : index
    %36 = vector.load %arg5[%c2_10, %c0_11] : memref<3x16xf32, #tpu.memory_space<vmem>>, vector<1x16xf32>
    %37 = vector.broadcast %35 : vector<512x1xf32> to vector<512x16xf32>
    %38 = vector.broadcast %36 : vector<1x16xf32> to vector<512x16xf32>
    %39 = arith.mulf %37, %38 : vector<512x16xf32>
    %40 = arith.addf %28, %39 : vector<512x16xf32>
    %41 = vector.broadcast %5 : vector<512x1xf32> to vector<512x16xf32>
    %42 = arith.subf %41, %34 : vector<512x16xf32>
    %43 = arith.mulf %40, %42 : vector<512x16xf32>
    %44 = arith.mulf %43, %42 : vector<512x16xf32>
    %45 = math.exp %44 : vector<512x16xf32>
    %46 = tpu.concatenate %45, %45, %45, %45 in 1 : vector<512x16xf32>, vector<512x16xf32>, vector<512x16xf32>, vector<512x16xf32> -> vector<512x64xf32>
    %47 = arith.mulf %4, %46 : vector<512x64xf32>
    %c0_12 = arith.constant 0 : index
    %c0_13 = arith.constant 0 : index
    %48 = vector.load %arg3[%c0_12, %c0_13] : memref<1x512xi32, #tpu.memory_space<vmem>>, vector<1x512xi32>
    %49 = tpu.iota {dimensions = array<i32: 0>} : vector<16x512xi32>
    %50 = vector.broadcast %48 : vector<1x512xi32> to vector<16x512xi32>
    %51 = arith.cmpi eq, %49, %50 : vector<16x512xi32>
    %52 = arith.extui %51 : vector<16x512xi1> to vector<16x512xi32>
    %53 = arith.sitofp %52 : vector<16x512xi32> to vector<16x512xf32>
    %c0_14 = arith.constant 0 : index
    %c0_15 = arith.constant 0 : index
    %54 = vector.load %arg6[%c0_14, %c0_15] : memref<16x64xf32, #tpu.memory_space<vmem>>, vector<16x64xf32>
    %cst = arith.constant dense<0.000000e+00> : vector<16x64xf32>
    %55 = tpu.matmul %53, %47, %cst {dimension_numbers = #tpu.dot_dimension_numbers<[1], [0], [0], [1], [0, 0, 1, 1], [], []>} : vector<16x512xf32>, vector<512x64xf32>, vector<16x64xf32> -> vector<16x64xf32>
    %56 = arith.addf %54, %55 : vector<16x64xf32>
    %c0_16 = arith.constant 0 : index
    %c0_17 = arith.constant 0 : index
    %57 = vector.load %arg6[%c0_16, %c0_17] : memref<16x64xf32, #tpu.memory_space<vmem>>, vector<16x64xf32>
    tpu.vector_store %arg6[%c0_16, %c0_17], %56 {strides = array<i32>} : memref<16x64xf32, #tpu.memory_space<vmem>>, vector<16x64xf32>,
    return
  }
  func.func @transform_0(%arg0: i32, %arg1: i32) -> (i32, i32) {
    %c1_i32 = arith.constant 1 : i32
    %0 = arith.muli %arg0, %c1_i32 : i32
    %1 = arith.addi %0, %arg1 : i32
    %c0_i32 = arith.constant 0 : i32
    %c0_i32_0 = arith.constant 0 : i32
    return %1, %c0_i32 : i32, i32
  }
  func.func @transform_1(%arg0: i32, %arg1: i32) -> (i32, i32) {
    %c1_i32 = arith.constant 1 : i32
    %0 = arith.muli %arg0, %c1_i32 : i32
    %1 = arith.addi %0, %arg1 : i32
    %c0_i32 = arith.constant 0 : i32
    %c0_i32_0 = arith.constant 0 : i32
    return %c0_i32, %1 : i32, i32
  }
  func.func @transform_2(%arg0: i32, %arg1: i32) -> (i32, i32) {
    %c0_i32 = arith.constant 0 : i32
    %c0_i32_0 = arith.constant 0 : i32
    %c0_i32_1 = arith.constant 0 : i32
    return %c0_i32, %c0_i32_0 : i32, i32
  }
  func.func @transform_3(%arg0: i32, %arg1: i32) -> (i32, i32) {
    %c0_i32 = arith.constant 0 : i32
    %c0_i32_0 = arith.constant 0 : i32
    %c0_i32_1 = arith.constant 0 : i32
    return %c0_i32, %c0_i32_0 : i32, i32
  }
  func.func @transform_4(%arg0: i32, %arg1: i32) -> (i32, i32) {
    %c0_i32 = arith.constant 0 : i32
    %c0_i32_0 = arith.constant 0 : i32
    return %arg0, %c0_i32 : i32, i32
  }
}

</mosaic_0001>

<llo_original>
// kernel: tpu_custom_call.1
$region0: #{tpu_custom_call.1}
  #allocation0 [shape = 'u32[]', space=smem, size = 0x4, offset = 0x4, fixed_abs, tag = 'smem constant byte address 0x4 - core index']
  #allocation1 [shape = 'u32[144,128]{1,0:T(1,128)}', space=vmem, size = 0x12000, scoped, tag = 'internal scratch']
  %s0 = inlined_call_operand.hbm [shape: f32[1024,128], index: 0, kind: input, shape index: {}]
  %s1 = inlined_call_operand.hbm [shape: s32[1,1024], index: 1, kind: input, shape index: {}]
  %s2 = inlined_call_operand.vmem [shape: f32[3,16], index: 2, kind: input, shape index: {}]
  %s3 = inlined_call_operand.vmem [shape: f32[3,16], index: 3, kind: input, shape index: {}]
  %s4 = inlined_call_operand.hbm [shape: f32[32,64], index: 4, kind: output, shape index: {}]
  %s5 = sld [smem:[#allocation0]]
  $region61: #{tpu_custom_call.1} parent=0
    _
  %s7 = ssub.s32 1, %s5
  %s8 = scalar_select 0, %s7, %s5
  $region1: #{tpu_custom_call.1} parent=0
    #allocation2 [shape = 'u8[524288]{0}', space=vmem, size = 0x80000, scoped, tag = 'input window, operand 0']
    #allocation3 [shape = 's32[2]{0}', space=sflag, size = 0x8, scoped, tag = 'scoped memory for tpu_custom_call.1']
    #allocation4 [shape = 's32[2]{0}', space=sflag, size = 0x8, scoped, tag = 'scoped memory for tpu_custom_call.1']
    #allocation5 [shape = 'u8[4096]{0}', space=vmem, size = 0x1000, scoped, tag = 'input window, operand 1']
    #allocation6 [shape = 's32[2]{0}', space=sflag, size = 0x8, scoped, tag = 'scoped memory for tpu_custom_call.1']
    #allocation7 [shape = 'u8[16384]{0}', space=vmem, size = 0x4000, scoped, tag = 'output window, operand 0']
    %9 = vsyncpa [#allocation3], 0
    %s10 = scalar_lea.sflag [#allocation3], 1
    %11 = vsyncpa %s10, 0
    %12 = vsyncpa [#allocation6], 0
    %s13 = scalar_lea.sflag [#allocation6], 1
    %14 = vsyncpa %s13, 0
    %15 = vsyncpa [#allocation4], 0
    %s16 = scalar_lea.sflag [#allocation4], 1
    %17 = vsyncpa %s16, 0
    loop: start=0, step=1, limit=4
    $region2: #{tpu_custom_call.1} parent=1 // loop_pre_header
      _
    $region3: #{tpu_custom_call.1} parent=1 // loop_header
      %s19 = sphi 0, %s23
      %p20 = scmp.ge.s32.totalorder %s19, 4
      %s26 = sphi 0, %s38
      %s27 = sphi 0, %s34
      %s28 = sphi 0, %s26
      %s29 = sphi 0, %s27
      %s30 = sphi 0, %s28
      %s31 = sphi 0, %s29
      %s43 = sphi 0, %s45
      %s46 = sphi 0, %s43
      %s47 = sphi 0, %s46
      %s63 = sphi 0, %s47
      %s71 = sphi 0, %s73
      %s74 = sphi 0, %s71
      %s75 = sphi 0, %s74
      %s91 = sphi 0, %s75
      %s95 = sphi 0, %s95
      %s97 = sphi 0, %s95
      %s98 = sphi 0, %s97
      %s112 = sphi 0, %s98
      %s116 = sphi 0, %s116
      %s118 = sphi 0, %s116
      %s119 = sphi 0, %s118
      %s133 = sphi 0, %s119
      %s139 = sphi 0, %s141
      %s142 = sphi 0, %s139
      %s143 = sphi 0, %s142
      %s159 = sphi 0, %s143
    $region4: #{tpu_custom_call.1} parent=1 // loop_header_branch
      %22 = sbr.rel (%p20) target = $region8
    $region5: #{tpu_custom_call.1} parent=1 // loop_body
      %s24 = ssub.s32 %s19, 1
      %s25 = ssub.s32 %s19, 2
      %s32 = sadd.s32 1, %s27
      %p33 = scmp.ge.s32.totalorder %s32, 1
      %s34 = scalar_select %p33, 0, %s32
      %s35 = sadd.s32 1, %s26
      %s36 = scalar_select %p33, %s35, %s26
      %p37 = scmp.ge.s32.totalorder %s36, 2
      %s38 = scalar_select %p37, 0, %s36
      %s39 = sadd.s32 %s26, %s27
      %s40 = sadd.s32 %s38, %s34
      %s41 = ssub.s32 %s39, %s40
      %p42 = scmp.eq.s32.totalorder %s41, 0
      %s44 = sadd.s32 %s43, 1
      %s45 = scalar_select %p42, %s43, %s44
      %p48 = pneg %p42
      %p49 = scmp.eq.s32.totalorder %s19, 1
      %p50 = por %p48, %p49
      %p51 = scmp.ne.s32.totalorder %s43, %s46
      %p52 = scmp.eq.s32.totalorder %s19, 0
      %p53 = por %p51, %p52
      %p54 = scmp.ne.s32.totalorder %s43, %s46
      %p55 = scmp.eq.s32.totalorder %s24, 1
      %p56 = por %p54, %p55
      %p57 = scmp.ne.s32.totalorder %s46, %s47
      %p58 = scmp.eq.s32.totalorder %s24, 0
      %p59 = por %p57, %p58
      %p60 = scmp.ne.s32.totalorder %s46, %s47
      %p61 = scmp.eq.s32.totalorder %s25, 1
      %p62 = por %p60, %p61
      %p64 = scmp.ne.s32.totalorder %s47, %s63
      %p65 = scmp.eq.s32.totalorder %s25, 0
      %p66 = por %p64, %p65
      %s67 = sadd.s32 %s26, %s27
      %s68 = sadd.s32 %s38, %s34
      %s69 = ssub.s32 %s67, %s68
      %p70 = scmp.eq.s32.totalorder %s69, 0
      %s72 = sadd.s32 %s71, 1
      %s73 = scalar_select %p70, %s71, %s72
      %p76 = pneg %p70
      %p77 = scmp.eq.s32.totalorder %s19, 1
      %p78 = por %p76, %p77
      %p79 = scmp.ne.s32.totalorder %s71, %s74
      %p80 = scmp.eq.s32.totalorder %s19, 0
      %p81 = por %p79, %p80
      %p82 = scmp.ne.s32.totalorder %s71, %s74
      %p83 = scmp.eq.s32.totalorder %s24, 1
      %p84 = por %p82, %p83
      %p85 = scmp.ne.s32.totalorder %s74, %s75
      %p86 = scmp.eq.s32.totalorder %s24, 0
      %p87 = por %p85, %p86
      %p88 = scmp.ne.s32.totalorder %s74, %s75
      %p89 = scmp.eq.s32.totalorder %s25, 1
      %p90 = por %p88, %p89
      %p92 = scmp.ne.s32.totalorder %s75, %s91
      %p93 = scmp.eq.s32.totalorder %s25, 0
      %p94 = por %p92, %p93
      %s96 = sadd.s32 %s95, 1
      %p99 = scmp.eq.s32.totalorder %s19, 1
      %p100 = scmp.ne.s32.totalorder %s95, %s97
      %p101 = scmp.eq.s32.totalorder %s19, 0
      %p102 = por %p100, %p101
      %p103 = scmp.ne.s32.totalorder %s95, %s97
      %p104 = scmp.eq.s32.totalorder %s24, 1
      %p105 = por %p103, %p104
      %p106 = scmp.ne.s32.totalorder %s97, %s98
      %p107 = scmp.eq.s32.totalorder %s24, 0
      %p108 = por %p106, %p107
      %p109 = scmp.ne.s32.totalorder %s97, %s98
      %p110 = scmp.eq.s32.totalorder %s25, 1
      %p111 = por %p109, %p110
      %p113 = scmp.ne.s32.totalorder %s98, %s112
      %p114 = scmp.eq.s32.totalorder %s25, 0
      %p115 = por %p113, %p114
      %s117 = sadd.s32 %s116, 1
      %p120 = scmp.eq.s32.totalorder %s19, 1
      %p121 = scmp.ne.s32.totalorder %s116, %s118
      %p122 = scmp.eq.s32.totalorder %s19, 0
      %p123 = por %p121, %p122
      %p124 = scmp.ne.s32.totalorder %s116, %s118
      %p125 = scmp.eq.s32.totalorder %s24, 1
      %p126 = por %p124, %p125
      %p127 = scmp.ne.s32.totalorder %s118, %s119
      %p128 = scmp.eq.s32.totalorder %s24, 0
      %p129 = por %p127, %p128
      %p130 = scmp.ne.s32.totalorder %s118, %s119
      %p131 = scmp.eq.s32.totalorder %s25, 1
      %p132 = por %p130, %p131
      %p134 = scmp.ne.s32.totalorder %s119, %s133
      %p135 = scmp.eq.s32.totalorder %s25, 0
      %p136 = por %p134, %p135
      %s137 = ssub.s32 %s26, %s38
      %p138 = scmp.eq.s32.totalorder %s137, 0
      %s140 = sadd.s32 %s139, 1
      %s141 = scalar_select %p138, %s139, %s140
      %p144 = pneg %p138
      %p145 = scmp.eq.s32.totalorder %s19, 1
      %p146 = por %p144, %p145
      %p147 = scmp.ne.s32.totalorder %s139, %s142
      %p148 = scmp.eq.s32.totalorder %s19, 0
      %p149 = por %p147, %p148
      %p150 = scmp.ne.s32.totalorder %s139, %s142
      %p151 = scmp.eq.s32.totalorder %s24, 1
      %p152 = por %p150, %p151
      %p153 = scmp.ne.s32.totalorder %s142, %s143
      %p154 = scmp.eq.s32.totalorder %s24, 0
      %p155 = por %p153, %p154
      %p156 = scmp.ne.s32.totalorder %s142, %s143
      %p157 = scmp.eq.s32.totalorder %s25, 1
      %p158 = por %p156, %p157
      %p160 = scmp.ne.s32.totalorder %s143, %s159
      %p161 = scmp.eq.s32.totalorder %s25, 0
      %p162 = por %p160, %p161
      %p163 = scmp.le.s32.totalorder 1, %s19
      %p164 = scmp.lt.s32.totalorder %s19, 3
      %p165 = pnand %p163, %p164
      %p166 = pneg %p165
      // Predicated region
      $region9: #{tpu_custom_call.1} parent=5 // pred_check
        _
      $region10: #{tpu_custom_call.1} parent=5 // pred_check_branch
        %168 = sbr.rel (%p165) target = $region12
      $region11: #{tpu_custom_call.1} parent=5 // pred_region
        %s169 = ssub.s32 %s19, 1
        // Predicated region
        $region13: #{tpu_custom_call.1} parent=11 // pred_check
          %p170 = pneg %p108
        $region14: #{tpu_custom_call.1} parent=11 // pred_check_branch
          %172 = sbr.rel (%p170) target = $region16
        $region15: #{tpu_custom_call.1} parent=11 // pred_region
          _
        $region16: #{tpu_custom_call.1} parent=11 // pred_fallthru
          _
        // Predicated region
        $region17: #{tpu_custom_call.1} parent=11 // pred_check
          %p173 = pneg %p129
        $region18: #{tpu_custom_call.1} parent=11 // pred_check_branch
          %175 = sbr.rel (%p173) target = $region20
        $region19: #{tpu_custom_call.1} parent=11 // pred_region
          _
        $region20: #{tpu_custom_call.1} parent=11 // pred_fallthru
          _
      $region12: #{tpu_custom_call.1} parent=5 // pred_fallthru
        _
      %p176 = scmp.lt.s32.totalorder %s19, 2
      // Predicated region
      $region21: #{tpu_custom_call.1} parent=5 // pred_check
        %p177 = pneg %p176
      $region22: #{tpu_custom_call.1} parent=5 // pred_check_branch
        %179 = sbr.rel (%p177) target = $region24
      $region23: #{tpu_custom_call.1} parent=5 // pred_region
        // Predicated region
        $region25: #{tpu_custom_call.1} parent=23 // pred_check
          %p180 = pneg %p53
        $region26: #{tpu_custom_call.1} parent=23 // pred_check_branch
          %182 = sbr.rel (%p180) target = $region28
        $region27: #{tpu_custom_call.1} parent=23 // pred_region
          %s183 = sand.u32 %s43, 1
          %s184 = scalar_lea.sflag [#allocation3], %s183
          %s185 = sand.u32 %s43, 1
          %s186 = smul.addr %s185, 512
          %s187 = scalar_lea.vmem [#allocation2], %s186
          %s188 = sadd.s32 %s26, %s27
          %s189 = smul.u32 64, %s188
          %s191 = ssub.s32 8192, 8192
          %192 = vsyncadd %s184, %s191
          %s193 = smul.addr %s189, 128
          %s194 = scalar_lea.hbm %s0, %s193
          %s195 = sshll.u32 %s187, 4
          %s196 = int_to_ptr.vmem [resolvable:$true] %s195
          %201 = dma.hbm_to_vmem [thread:$0]  %s194, 8192, %s196, %s184, 128, 128, 8
        $region28: #{tpu_custom_call.1} parent=23 // pred_fallthru
          _
        // Predicated region
        $region29: #{tpu_custom_call.1} parent=23 // pred_check
          %p202 = pneg %p81
        $region30: #{tpu_custom_call.1} parent=23 // pred_check_branch
          %204 = sbr.rel (%p202) target = $region32
        $region31: #{tpu_custom_call.1} parent=23 // pred_region
          %s205 = sand.u32 %s71, 1
          %s206 = scalar_lea.sflag [#allocation6], %s205
          %s207 = sand.u32 %s71, 1
          %s208 = smul.addr %s207, 4
          %s209 = scalar_lea.vmem [#allocation5], %s208
          %s210 = sadd.s32 %s26, %s27
          %s211 = smul.u32 4, %s210
          %s213 = ssub.s32 64, 64
          %214 = vsyncadd %s206, %s213
          %s215 = smul.addr %s211, 16
          %s216 = scalar_lea.hbm %s1, %s215
          %s218 = sshll.u32 %s209, 4
          %s219 = int_to_ptr.vmem [resolvable:$true] %s218
          %221 = dma.hbm_to_vmem [thread:$0]  %s216, 64, %s219, %s206
        $region32: #{tpu_custom_call.1} parent=23 // pred_fallthru
          _
      $region24: #{tpu_custom_call.1} parent=5 // pred_fallthru
        _
      %p222 = scmp.le.s32.totalorder 1, %s19
      %p223 = scmp.lt.s32.totalorder %s19, 3
      %p224 = pnand %p222, %p223
      %p225 = pneg %p224
      // Predicated region
      $region33: #{tpu_custom_call.1} parent=5 // pred_check
        _
      $region34: #{tpu_custom_call.1} parent=5 // pred_check_branch
        %227 = sbr.rel (%p224) target = $region36
      $region35: #{tpu_custom_call.1} parent=5 // pred_region
        %s228 = ssub.s32 %s19, 1
        %s229 = sand.u32 %s46, 1
        %s230 = scalar_lea.sflag [#allocation3], %s229
        %s231 = sand.u32 %s46, 1
        %s232 = smul.addr %s231, 512
        %s233 = scalar_lea.vmem [#allocation2], %s232
        // Predicated region
        $region37: #{tpu_custom_call.1} parent=35 // pred_check
          %p234 = pneg %p59
        $region38: #{tpu_custom_call.1} parent=35 // pred_check_branch
          %236 = sbr.rel (%p234) target = $region40
        $region39: #{tpu_custom_call.1} parent=35 // pred_region
          %237 = dma.done %s230, 8192
        $region40: #{tpu_custom_call.1} parent=35 // pred_fallthru
          _
        %s238 = sand.u32 %s74, 1
        %s239 = scalar_lea.sflag [#allocation6], %s238
        %s240 = sand.u32 %s74, 1
        %s241 = smul.addr %s240, 4
        %s242 = scalar_lea.vmem [#allocation5], %s241
        // Predicated region
        $region41: #{tpu_custom_call.1} parent=35 // pred_check
          %p243 = pneg %p87
        $region42: #{tpu_custom_call.1} parent=35 // pred_check_branch
          %245 = sbr.rel (%p243) target = $region44
        $region43: #{tpu_custom_call.1} parent=35 // pred_region
          %246 = dma.done %s239, 64
        $region44: #{tpu_custom_call.1} parent=35 // pred_fallthru
          _
        %s247 = sand.u32 %s46, 1
        %s248 = scalar_lea.sflag [#allocation3], %s247
        %s249 = sand.u32 %s46, 1
        %s250 = smul.addr %s249, 512
        %s251 = scalar_lea.vmem [#allocation2], %s250
        %p252 = pneg %p59
        %p253 = pneg %p56
        %s254 = sand.u32 %s74, 1
        %s255 = scalar_lea.sflag [#allocation6], %s254
        %s256 = sand.u32 %s74, 1
        %s257 = smul.addr %s256, 4
        %s258 = scalar_lea.vmem [#allocation5], %s257
        %p259 = pneg %p87
        %p260 = pneg %p84
        %p261 = pneg %p108
        %p262 = pneg %p105
        %p263 = pneg %p129
        %p264 = pneg %p126
        %p265 = pneg %p155
        %p266 = pneg %p152
        %s267 = sand.u32 %s142, 1
        %s268 = scalar_lea.sflag [#allocation4], %s267
        %s269 = sand.u32 %s142, 1
        %s270 = smul.addr %s269, 16
        %s271 = scalar_lea.vmem [#allocation7], %s270
        %s272 = sadd.s32 %s28, %s29
        %s273 = smul.u32 64, %s272
        %s274 = sadd.s32 %s28, %s29
        %s275 = smul.u32 4, %s274
        %s276 = smul.u32 2, %s28
        %p277 = scmp.eq.s32.totalorder %s29, 0
        // Predicated region
        $region45: #{tpu_custom_call.1} parent=35 // pred_check
          %p278 = pneg %p277
        $region46: #{tpu_custom_call.1} parent=35 // pred_check_branch
          %280 = sbr.rel (%p278) target = $region48
        $region47: #{tpu_custom_call.1} parent=35 // pred_region
          %vm281 = vcmask 523264
          %282 = vst.msk [vmem:[%s271] sm:$0xff] %vm281, 0.0
          %283 = vst.msk [vmem:[%s271 + $0x8] sm:$0xff] %vm281, 0.0
        $region48: #{tpu_custom_call.1} parent=35 // pred_fallthru
          _
        %v284 = vld [vmem:[%s233] sm:$0xff]
        %v285 = vld [vmem:[%s233 + $0x8] sm:$0xff]
        %v286 = vld [vmem:[%s233 + $0x10] sm:$0xff]
        %v287 = vld [vmem:[%s233 + $0x18] sm:$0xff]
        %v288 = vld [vmem:[%s233 + $0x20] sm:$0xff]
        %v289 = vld [vmem:[%s233 + $0x28] sm:$0xff]
        %v290 = vld [vmem:[%s233 + $0x30] sm:$0xff]
        %v291 = vld [vmem:[%s233 + $0x38] sm:$0xff]
        %v292 = vld [vmem:[%s233 + $0x40] sm:$0xff]
        %v293 = vld [vmem:[%s233 + $0x48] sm:$0xff]
        %v294 = vld [vmem:[%s233 + $0x50] sm:$0xff]
        %v295 = vld [vmem:[%s233 + $0x58] sm:$0xff]
        %v296 = vld [vmem:[%s233 + $0x60] sm:$0xff]
        %v297 = vld [vmem:[%s233 + $0x68] sm:$0xff]
        %v298 = vld [vmem:[%s233 + $0x70] sm:$0xff]
        %v299 = vld [vmem:[%s233 + $0x78] sm:$0xff]
        %v300 = vld [vmem:[%s233 + $0x80] sm:$0xff]
        %v301 = vld [vmem:[%s233 + $0x88] sm:$0xff]
        %v302 = vld [vmem:[%s233 + $0x90] sm:$0xff]
        %v303 = vld [vmem:[%s233 + $0x98] sm:$0xff]
        %v304 = vld [vmem:[%s233 + $0xa0] sm:$0xff]
        %v305 = vld [vmem:[%s233 + $0xa8] sm:$0xff]
        %v306 = vld [vmem:[%s233 + $0xb0] sm:$0xff]
        %v307 = vld [vmem:[%s233 + $0xb8] sm:$0xff]
        %v308 = vld [vmem:[%s233 + $0xc0] sm:$0xff]
        %v309 = vld [vmem:[%s233 + $0xc8] sm:$0xff]
        %v310 = vld [vmem:[%s233 + $0xd0] sm:$0xff]
        %v311 = vld [vmem:[%s233 + $0xd8] sm:$0xff]
        %v312 = vld [vmem:[%s233 + $0xe0] sm:$0xff]
        %v313 = vld [vmem:[%s233 + $0xe8] sm:$0xff]
        %v314 = vld [vmem:[%s233 + $0xf0] sm:$0xff]
        %v315 = vld [vmem:[%s233 + $0xf8] sm:$0xff]
        %v316 = vld [vmem:[%s233 + $0x100] sm:$0xff]
        %v317 = vld [vmem:[%s233 + $0x108] sm:$0xff]
        %v318 = vld [vmem:[%s233 + $0x110] sm:$0xff]
        %v319 = vld [vmem:[%s233 + $0x118] sm:$0xff]
        %v320 = vld [vmem:[%s233 + $0x120] sm:$0xff]
        %v321 = vld [vmem:[%s233 + $0x128] sm:$0xff]
        %v322 = vld [vmem:[%s233 + $0x130] sm:$0xff]
        %v323 = vld [vmem:[%s233 + $0x138] sm:$0xff]
        %v324 = vld [vmem:[%s233 + $0x140] sm:$0xff]
        %v325 = vld [vmem:[%s233 + $0x148] sm:$0xff]
        %v326 = vld [vmem:[%s233 + $0x150] sm:$0xff]
        %v327 = vld [vmem:[%s233 + $0x158] sm:$0xff]
        %v328 = vld [vmem:[%s233 + $0x160] sm:$0xff]
        %v329 = vld [vmem:[%s233 + $0x168] sm:$0xff]
        %v330 = vld [vmem:[%s233 + $0x170] sm:$0xff]
        %v331 = vld [vmem:[%s233 + $0x178] sm:$0xff]
        %v332 = vld [vmem:[%s233 + $0x180] sm:$0xff]
        %v333 = vld [vmem:[%s233 + $0x188] sm:$0xff]
        %v334 = vld [vmem:[%s233 + $0x190] sm:$0xff]
        %v335 = vld [vmem:[%s233 + $0x198] sm:$0xff]
        %v336 = vld [vmem:[%s233 + $0x1a0] sm:$0xff]
        %v337 = vld [vmem:[%s233 + $0x1a8] sm:$0xff]
        %v338 = vld [vmem:[%s233 + $0x1b0] sm:$0xff]
        %v339 = vld [vmem:[%s233 + $0x1b8] sm:$0xff]
        %v340 = vld [vmem:[%s233 + $0x1c0] sm:$0xff]
        %v341 = vld [vmem:[%s233 + $0x1c8] sm:$0xff]
        %v342 = vld [vmem:[%s233 + $0x1d0] sm:$0xff]
        %v343 = vld [vmem:[%s233 + $0x1d8] sm:$0xff]
        %v344 = vld [vmem:[%s233 + $0x1e0] sm:$0xff]
        %v345 = vld [vmem:[%s233 + $0x1e8] sm:$0xff]
        %v346 = vld [vmem:[%s233 + $0x1f0] sm:$0xff]
        %v347 = vld [vmem:[%s233 + $0x1f8] sm:$0xff]
        %v348 = vld [vmem:[%s2] sm:$0x1]
        %350 = vset.pattern.permute.xlu0 65
        %351 = vperm.xlu0 %350, %v284
        %v352 = vpop.permute.xlu0 %351
        %355 = vset.pattern.permute.xlu0 65
        %356 = vperm.xlu0 %355, %v285
        %v357 = vpop.permute.xlu0 %356
        %360 = vset.pattern.permute.xlu0 65
        %361 = vperm.xlu0 %360, %v286
        %v362 = vpop.permute.xlu0 %361
        %365 = vset.pattern.permute.xlu0 65
        %366 = vperm.xlu0 %365, %v287
        %v367 = vpop.permute.xlu0 %366
        %370 = vset.pattern.permute.xlu0 65
        %371 = vperm.xlu0 %370, %v288
        %v372 = vpop.permute.xlu0 %371
        %375 = vset.pattern.permute.xlu0 65
        %376 = vperm.xlu0 %375, %v289
        %v377 = vpop.permute.xlu0 %376
        %380 = vset.pattern.permute.xlu0 65
        %381 = vperm.xlu0 %380, %v290
        %v382 = vpop.permute.xlu0 %381
        %385 = vset.pattern.permute.xlu0 65
        %386 = vperm.xlu0 %385, %v291
        %v387 = vpop.permute.xlu0 %386
        %390 = vset.pattern.permute.xlu0 65
        %391 = vperm.xlu0 %390, %v292
        %v392 = vpop.permute.xlu0 %391
        %395 = vset.pattern.permute.xlu0 65
        %396 = vperm.xlu0 %395, %v293
        %v397 = vpop.permute.xlu0 %396
        %400 = vset.pattern.permute.xlu0 65
        %401 = vperm.xlu0 %400, %v294
        %v402 = vpop.permute.xlu0 %401
        %405 = vset.pattern.permute.xlu0 65
        %406 = vperm.xlu0 %405, %v295
        %v407 = vpop.permute.xlu0 %406
        %410 = vset.pattern.permute.xlu0 65
        %411 = vperm.xlu0 %410, %v296
        %v412 = vpop.permute.xlu0 %411
        %415 = vset.pattern.permute.xlu0 65
        %416 = vperm.xlu0 %415, %v297
        %v417 = vpop.permute.xlu0 %416
        %420 = vset.pattern.permute.xlu0 65
        %421 = vperm.xlu0 %420, %v298
        %v422 = vpop.permute.xlu0 %421
        %425 = vset.pattern.permute.xlu0 65
        %426 = vperm.xlu0 %425, %v299
        %v427 = vpop.permute.xlu0 %426
        %430 = vset.pattern.permute.xlu0 65
        %431 = vperm.xlu0 %430, %v300
        %v432 = vpop.permute.xlu0 %431
        %435 = vset.pattern.permute.xlu0 65
        %436 = vperm.xlu0 %435, %v301
        %v437 = vpop.permute.xlu0 %436
        %440 = vset.pattern.permute.xlu0 65
        %441 = vperm.xlu0 %440, %v302
        %v442 = vpop.permute.xlu0 %441
        %445 = vset.pattern.permute.xlu0 65
        %446 = vperm.xlu0 %445, %v303
        %v447 = vpop.permute.xlu0 %446
        %450 = vset.pattern.permute.xlu0 65
        %451 = vperm.xlu0 %450, %v304
        %v452 = vpop.permute.xlu0 %451
        %455 = vset.pattern.permute.xlu0 65
        %456 = vperm.xlu0 %455, %v305
        %v457 = vpop.permute.xlu0 %456
        %460 = vset.pattern.permute.xlu0 65
        %461 = vperm.xlu0 %460, %v306
        %v462 = vpop.permute.xlu0 %461
        %465 = vset.pattern.permute.xlu0 65
        %466 = vperm.xlu0 %465, %v307
        %v467 = vpop.permute.xlu0 %466
        %470 = vset.pattern.permute.xlu0 65
        %471 = vperm.xlu0 %470, %v308
        %v472 = vpop.permute.xlu0 %471
        %475 = vset.pattern.permute.xlu0 65
        %476 = vperm.xlu0 %475, %v309
        %v477 = vpop.permute.xlu0 %476
        %480 = vset.pattern.permute.xlu0 65
        %481 = vperm.xlu0 %480, %v310
        %v482 = vpop.permute.xlu0 %481
        %485 = vset.pattern.permute.xlu0 65
        %486 = vperm.xlu0 %485, %v311
        %v487 = vpop.permute.xlu0 %486
        %490 = vset.pattern.permute.xlu0 65
        %491 = vperm.xlu0 %490, %v312
        %v492 = vpop.permute.xlu0 %491
        %495 = vset.pattern.permute.xlu0 65
        %496 = vperm.xlu0 %495, %v313
        %v497 = vpop.permute.xlu0 %496
        %500 = vset.pattern.permute.xlu0 65
        %501 = vperm.xlu0 %500, %v314
        %v502 = vpop.permute.xlu0 %501
        %505 = vset.pattern.permute.xlu0 65
        %506 = vperm.xlu0 %505, %v315
        %v507 = vpop.permute.xlu0 %506
        %510 = vset.pattern.permute.xlu0 65
        %511 = vperm.xlu0 %510, %v316
        %v512 = vpop.permute.xlu0 %511
        %515 = vset.pattern.permute.xlu0 65
        %516 = vperm.xlu0 %515, %v317
        %v517 = vpop.permute.xlu0 %516
        %520 = vset.pattern.permute.xlu0 65
        %521 = vperm.xlu0 %520, %v318
        %v522 = vpop.permute.xlu0 %521
        %525 = vset.pattern.permute.xlu0 65
        %526 = vperm.xlu0 %525, %v319
        %v527 = vpop.permute.xlu0 %526
        %530 = vset.pattern.permute.xlu0 65
        %531 = vperm.xlu0 %530, %v320
        %v532 = vpop.permute.xlu0 %531
        %535 = vset.pattern.permute.xlu0 65
        %536 = vperm.xlu0 %535, %v321
        %v537 = vpop.permute.xlu0 %536
        %540 = vset.pattern.permute.xlu0 65
        %541 = vperm.xlu0 %540, %v322
        %v542 = vpop.permute.xlu0 %541
        %545 = vset.pattern.permute.xlu0 65
        %546 = vperm.xlu0 %545, %v323
        %v547 = vpop.permute.xlu0 %546
        %550 = vset.pattern.permute.xlu0 65
        %551 = vperm.xlu0 %550, %v324
        %v552 = vpop.permute.xlu0 %551
        %555 = vset.pattern.permute.xlu0 65
        %556 = vperm.xlu0 %555, %v325
        %v557 = vpop.permute.xlu0 %556
        %560 = vset.pattern.permute.xlu0 65
        %561 = vperm.xlu0 %560, %v326
        %v562 = vpop.permute.xlu0 %561
        %565 = vset.pattern.permute.xlu0 65
        %566 = vperm.xlu0 %565, %v327
        %v567 = vpop.permute.xlu0 %566
        %570 = vset.pattern.permute.xlu0 65
        %571 = vperm.xlu0 %570, %v328
        %v572 = vpop.permute.xlu0 %571
        %575 = vset.pattern.permute.xlu0 65
        %576 = vperm.xlu0 %575, %v329
        %v577 = vpop.permute.xlu0 %576
        %580 = vset.pattern.permute.xlu0 65
        %581 = vperm.xlu0 %580, %v330
        %v582 = vpop.permute.xlu0 %581
        %585 = vset.pattern.permute.xlu0 65
        %586 = vperm.xlu0 %585, %v331
        %v587 = vpop.permute.xlu0 %586
        %590 = vset.pattern.permute.xlu0 65
        %591 = vperm.xlu0 %590, %v332
        %v592 = vpop.permute.xlu0 %591
        %595 = vset.pattern.permute.xlu0 65
        %596 = vperm.xlu0 %595, %v333
        %v597 = vpop.permute.xlu0 %596
        %600 = vset.pattern.permute.xlu0 65
        %601 = vperm.xlu0 %600, %v334
        %v602 = vpop.permute.xlu0 %601
        %605 = vset.pattern.permute.xlu0 65
        %606 = vperm.xlu0 %605, %v335
        %v607 = vpop.permute.xlu0 %606
        %610 = vset.pattern.permute.xlu0 65
        %611 = vperm.xlu0 %610, %v336
        %v612 = vpop.permute.xlu0 %611
        %615 = vset.pattern.permute.xlu0 65
        %616 = vperm.xlu0 %615, %v337
        %v617 = vpop.permute.xlu0 %616
        %620 = vset.pattern.permute.xlu0 65
        %621 = vperm.xlu0 %620, %v338
        %v622 = vpop.permute.xlu0 %621
        %625 = vset.pattern.permute.xlu0 65
        %626 = vperm.xlu0 %625, %v339
        %v627 = vpop.permute.xlu0 %626
        %630 = vset.pattern.permute.xlu0 65
        %631 = vperm.xlu0 %630, %v340
        %v632 = vpop.permute.xlu0 %631
        %635 = vset.pattern.permute.xlu0 65
        %636 = vperm.xlu0 %635, %v341
        %v637 = vpop.permute.xlu0 %636
        %640 = vset.pattern.permute.xlu0 65
        %641 = vperm.xlu0 %640, %v342
        %v642 = vpop.permute.xlu0 %641
        %645 = vset.pattern.permute.xlu0 65
        %646 = vperm.xlu0 %645, %v343
        %v647 = vpop.permute.xlu0 %646
        %650 = vset.pattern.permute.xlu0 65
        %651 = vperm.xlu0 %650, %v344
        %v652 = vpop.permute.xlu0 %651
        %655 = vset.pattern.permute.xlu0 65
        %656 = vperm.xlu0 %655, %v345
        %v657 = vpop.permute.xlu0 %656
        %660 = vset.pattern.permute.xlu0 65
        %661 = vperm.xlu0 %660, %v346
        %v662 = vpop.permute.xlu0 %661
        %665 = vset.pattern.permute.xlu0 65
        %666 = vperm.xlu0 %665, %v347
        %v667 = vpop.permute.xlu0 %666
        %v669 = vlaneseq
        %v670 = vshrl.u32 %v669, 7
        %v671 = vsub.s32 0, %v670
        %v672 = vrot.slane %v348, %v671
        %v673 = vmul.f32 %v352, %v672
        %v674 = vmul.f32 %v357, %v672
        %v675 = vmul.f32 %v362, %v672
        %v676 = vmul.f32 %v367, %v672
        %v677 = vmul.f32 %v372, %v672
        %v678 = vmul.f32 %v377, %v672
        %v679 = vmul.f32 %v382, %v672
        %v680 = vmul.f32 %v387, %v672
        %v681 = vmul.f32 %v392, %v672
        %v682 = vmul.f32 %v397, %v672
        %v683 = vmul.f32 %v402, %v672
        %v684 = vmul.f32 %v407, %v672
        %v685 = vmul.f32 %v412, %v672
        %v686 = vmul.f32 %v417, %v672
        %v687 = vmul.f32 %v422, %v672
        %v688 = vmul.f32 %v427, %v672
        %v689 = vmul.f32 %v432, %v672
        %v690 = vmul.f32 %v437, %v672
        %v691 = vmul.f32 %v442, %v672
        %v692 = vmul.f32 %v447, %v672
        %v693 = vmul.f32 %v452, %v672
        %v694 = vmul.f32 %v457, %v672
        %v695 = vmul.f32 %v462, %v672
        %v696 = vmul.f32 %v467, %v672
        %v697 = vmul.f32 %v472, %v672
        %v698 = vmul.f32 %v477, %v672
        %v699 = vmul.f32 %v482, %v672
        %v700 = vmul.f32 %v487, %v672
        %v701 = vmul.f32 %v492, %v672
        %v702 = vmul.f32 %v497, %v672
        %v703 = vmul.f32 %v502, %v672
        %v704 = vmul.f32 %v507, %v672
        %v705 = vmul.f32 %v512, %v672
        %v706 = vmul.f32 %v517, %v672
        %v707 = vmul.f32 %v522, %v672
        %v708 = vmul.f32 %v527, %v672
        %v709 = vmul.f32 %v532, %v672
        %v710 = vmul.f32 %v537, %v672
        %v711 = vmul.f32 %v542, %v672
        %v712 = vmul.f32 %v547, %v672
        %v713 = vmul.f32 %v552, %v672
        %v714 = vmul.f32 %v557, %v672
        %v715 = vmul.f32 %v562, %v672
        %v716 = vmul.f32 %v567, %v672
        %v717 = vmul.f32 %v572, %v672
        %v718 = vmul.f32 %v577, %v672
        %v719 = vmul.f32 %v582, %v672
        %v720 = vmul.f32 %v587, %v672
        %v721 = vmul.f32 %v592, %v672
        %v722 = vmul.f32 %v597, %v672
        %v723 = vmul.f32 %v602, %v672
        %v724 = vmul.f32 %v607, %v672
        %v725 = vmul.f32 %v612, %v672
        %v726 = vmul.f32 %v617, %v672
        %v727 = vmul.f32 %v622, %v672
        %v728 = vmul.f32 %v627, %v672
        %v729 = vmul.f32 %v632, %v672
        %v730 = vmul.f32 %v637, %v672
        %v731 = vmul.f32 %v642, %v672
        %v732 = vmul.f32 %v647, %v672
        %v733 = vmul.f32 %v652, %v672
        %v734 = vmul.f32 %v657, %v672
        %v735 = vmul.f32 %v662, %v672
        %v736 = vmul.f32 %v667, %v672
        %v737 = vld [vmem:[%s3] sm:$0x1]
        %v738 = vlaneseq
        %v739 = vshrl.u32 %v738, 7
        %v740 = vsub.s32 0, %v739
        %v741 = vrot.slane %v737, %v740
        %v742 = vmul.f32 %v352, %v741
        %v743 = vmul.f32 %v357, %v741
        %v744 = vmul.f32 %v362, %v741
        %v745 = vmul.f32 %v367, %v741
        %v746 = vmul.f32 %v372, %v741
        %v747 = vmul.f32 %v377, %v741
        %v748 = vmul.f32 %v382, %v741
        %v749 = vmul.f32 %v387, %v741
        %v750 = vmul.f32 %v392, %v741
        %v751 = vmul.f32 %v397, %v741
        %v752 = vmul.f32 %v402, %v741
        %v753 = vmul.f32 %v407, %v741
        %v754 = vmul.f32 %v412, %v741
        %v755 = vmul.f32 %v417, %v741
        %v756 = vmul.f32 %v422, %v741
        %v757 = vmul.f32 %v427, %v741
        %v758 = vmul.f32 %v432, %v741
        %v759 = vmul.f32 %v437, %v741
        %v760 = vmul.f32 %v442, %v741
        %v761 = vmul.f32 %v447, %v741
        %v762 = vmul.f32 %v452, %v741
        %v763 = vmul.f32 %v457, %v741
        %v764 = vmul.f32 %v462, %v741
        %v765 = vmul.f32 %v467, %v741
        %v766 = vmul.f32 %v472, %v741
        %v767 = vmul.f32 %v477, %v741
        %v768 = vmul.f32 %v482, %v741
        %v769 = vmul.f32 %v487, %v741
        %v770 = vmul.f32 %v492, %v741
        %v771 = vmul.f32 %v497, %v741
        %v772 = vmul.f32 %v502, %v741
        %v773 = vmul.f32 %v507, %v741
        %v774 = vmul.f32 %v512, %v741
        %v775 = vmul.f32 %v517, %v741
        %v776 = vmul.f32 %v522, %v741
        %v777 = vmul.f32 %v527, %v741
        %v778 = vmul.f32 %v532, %v741
        %v779 = vmul.f32 %v537, %v741
        %v780 = vmul.f32 %v542, %v741
        %v781 = vmul.f32 %v547, %v741
        %v782 = vmul.f32 %v552, %v741
        %v783 = vmul.f32 %v557, %v741
        %v784 = vmul.f32 %v562, %v741
        %v785 = vmul.f32 %v567, %v741
        %v786 = vmul.f32 %v572, %v741
        %v787 = vmul.f32 %v577, %v741
        %v788 = vmul.f32 %v582, %v741
        %v789 = vmul.f32 %v587, %v741
        %v790 = vmul.f32 %v592, %v741
        %v791 = vmul.f32 %v597, %v741
        %v792 = vmul.f32 %v602, %v741
        %v793 = vmul.f32 %v607, %v741
        %v794 = vmul.f32 %v612, %v741
        %v795 = vmul.f32 %v617, %v741
        %v796 = vmul.f32 %v622, %v741
        %v797 = vmul.f32 %v627, %v741
        %v798 = vmul.f32 %v632, %v741
        %v799 = vmul.f32 %v637, %v741
        %v800 = vmul.f32 %v642, %v741
        %v801 = vmul.f32 %v647, %v741
        %v802 = vmul.f32 %v652, %v741
        %v803 = vmul.f32 %v657, %v741
        %v804 = vmul.f32 %v662, %v741
        %v805 = vmul.f32 %v667, %v741
        %v806 = vld [vmem:[%s2 + $0x1] sm:$0x1]
        %807 = vset.pattern.permute.xlu0 66
        %808 = vperm.xlu0 %807, %v284
        %v809 = vpop.permute.xlu0 %808
        %811 = vset.pattern.permute.xlu0 66
        %812 = vperm.xlu0 %811, %v285
        %v813 = vpop.permute.xlu0 %812
        %815 = vset.pattern.permute.xlu0 66
        %816 = vperm.xlu0 %815, %v286
        %v817 = vpop.permute.xlu0 %816
        %819 = vset.pattern.permute.xlu0 66
        %820 = vperm.xlu0 %819, %v287
        %v821 = vpop.permute.xlu0 %820
        %823 = vset.pattern.permute.xlu0 66
        %824 = vperm.xlu0 %823, %v288
        %v825 = vpop.permute.xlu0 %824
        %827 = vset.pattern.permute.xlu0 66
        %828 = vperm.xlu0 %827, %v289
        %v829 = vpop.permute.xlu0 %828
        %831 = vset.pattern.permute.xlu0 66
        %832 = vperm.xlu0 %831, %v290
        %v833 = vpop.permute.xlu0 %832
        %835 = vset.pattern.permute.xlu0 66
        %836 = vperm.xlu0 %835, %v291
        %v837 = vpop.permute.xlu0 %836
        %839 = vset.pattern.permute.xlu0 66
        %840 = vperm.xlu0 %839, %v292
        %v841 = vpop.permute.xlu0 %840
        %843 = vset.pattern.permute.xlu0 66
        %844 = vperm.xlu0 %843, %v293
        %v845 = vpop.permute.xlu0 %844
        %847 = vset.pattern.permute.xlu0 66
        %848 = vperm.xlu0 %847, %v294
        %v849 = vpop.permute.xlu0 %848
        %851 = vset.pattern.permute.xlu0 66
        %852 = vperm.xlu0 %851, %v295
        %v853 = vpop.permute.xlu0 %852
        %855 = vset.pattern.permute.xlu0 66
        %856 = vperm.xlu0 %855, %v296
        %v857 = vpop.permute.xlu0 %856
        %859 = vset.pattern.permute.xlu0 66
        %860 = vperm.xlu0 %859, %v297
        %v861 = vpop.permute.xlu0 %860
        %863 = vset.pattern.permute.xlu0 66
        %864 = vperm.xlu0 %863, %v298
        %v865 = vpop.permute.xlu0 %864
        %867 = vset.pattern.permute.xlu0 66
        %868 = vperm.xlu0 %867, %v299
        %v869 = vpop.permute.xlu0 %868
        %871 = vset.pattern.permute.xlu0 66
        %872 = vperm.xlu0 %871, %v300
        %v873 = vpop.permute.xlu0 %872
        %875 = vset.pattern.permute.xlu0 66
        %876 = vperm.xlu0 %875, %v301
        %v877 = vpop.permute.xlu0 %876
        %879 = vset.pattern.permute.xlu0 66
        %880 = vperm.xlu0 %879, %v302
        %v881 = vpop.permute.xlu0 %880
        %883 = vset.pattern.permute.xlu0 66
        %884 = vperm.xlu0 %883, %v303
        %v885 = vpop.permute.xlu0 %884
        %887 = vset.pattern.permute.xlu0 66
        %888 = vperm.xlu0 %887, %v304
        %v889 = vpop.permute.xlu0 %888
        %891 = vset.pattern.permute.xlu0 66
        %892 = vperm.xlu0 %891, %v305
        %v893 = vpop.permute.xlu0 %892
        %895 = vset.pattern.permute.xlu0 66
        %896 = vperm.xlu0 %895, %v306
        %v897 = vpop.permute.xlu0 %896
        %899 = vset.pattern.permute.xlu0 66
        %900 = vperm.xlu0 %899, %v307
        %v901 = vpop.permute.xlu0 %900
        %903 = vset.pattern.permute.xlu0 66
        %904 = vperm.xlu0 %903, %v308
        %v905 = vpop.permute.xlu0 %904
        %907 = vset.pattern.permute.xlu0 66
        %908 = vperm.xlu0 %907, %v309
        %v909 = vpop.permute.xlu0 %908
        %911 = vset.pattern.permute.xlu0 66
        %912 = vperm.xlu0 %911, %v310
        %v913 = vpop.permute.xlu0 %912
        %915 = vset.pattern.permute.xlu0 66
        %916 = vperm.xlu0 %915, %v311
        %v917 = vpop.permute.xlu0 %916
        %919 = vset.pattern.permute.xlu0 66
        %920 = vperm.xlu0 %919, %v312
        %v921 = vpop.permute.xlu0 %920
        %923 = vset.pattern.permute.xlu0 66
        %924 = vperm.xlu0 %923, %v313
        %v925 = vpop.permute.xlu0 %924
        %927 = vset.pattern.permute.xlu0 66
        %928 = vperm.xlu0 %927, %v314
        %v929 = vpop.permute.xlu0 %928
        %931 = vset.pattern.permute.xlu0 66
        %932 = vperm.xlu0 %931, %v315
        %v933 = vpop.permute.xlu0 %932
        %935 = vset.pattern.permute.xlu0 66
        %936 = vperm.xlu0 %935, %v316
        %v937 = vpop.permute.xlu0 %936
        %939 = vset.pattern.permute.xlu0 66
        %940 = vperm.xlu0 %939, %v317
        %v941 = vpop.permute.xlu0 %940
        %943 = vset.pattern.permute.xlu0 66
        %944 = vperm.xlu0 %943, %v318
        %v945 = vpop.permute.xlu0 %944
        %947 = vset.pattern.permute.xlu0 66
        %948 = vperm.xlu0 %947, %v319
        %v949 = vpop.permute.xlu0 %948
        %951 = vset.pattern.permute.xlu0 66
        %952 = vperm.xlu0 %951, %v320
        %v953 = vpop.permute.xlu0 %952
        %955 = vset.pattern.permute.xlu0 66
        %956 = vperm.xlu0 %955, %v321
        %v957 = vpop.permute.xlu0 %956
        %959 = vset.pattern.permute.xlu0 66
        %960 = vperm.xlu0 %959, %v322
        %v961 = vpop.permute.xlu0 %960
        %963 = vset.pattern.permute.xlu0 66
        %964 = vperm.xlu0 %963, %v323
        %v965 = vpop.permute.xlu0 %964
        %967 = vset.pattern.permute.xlu0 66
        %968 = vperm.xlu0 %967, %v324
        %v969 = vpop.permute.xlu0 %968
        %971 = vset.pattern.permute.xlu0 66
        %972 = vperm.xlu0 %971, %v325
        %v973 = vpop.permute.xlu0 %972
        %975 = vset.pattern.permute.xlu0 66
        %976 = vperm.xlu0 %975, %v326
        %v977 = vpop.permute.xlu0 %976
        %979 = vset.pattern.permute.xlu0 66
        %980 = vperm.xlu0 %979, %v327
        %v981 = vpop.permute.xlu0 %980
        %983 = vset.pattern.permute.xlu0 66
        %984 = vperm.xlu0 %983, %v328
        %v985 = vpop.permute.xlu0 %984
        %987 = vset.pattern.permute.xlu0 66
        %988 = vperm.xlu0 %987, %v329
        %v989 = vpop.permute.xlu0 %988
        %991 = vset.pattern.permute.xlu0 66
        %992 = vperm.xlu0 %991, %v330
        %v993 = vpop.permute.xlu0 %992
        %995 = vset.pattern.permute.xlu0 66
        %996 = vperm.xlu0 %995, %v331
        %v997 = vpop.permute.xlu0 %996
        %999 = vset.pattern.permute.xlu0 66
        %1000 = vperm.xlu0 %999, %v332
        %v1001 = vpop.permute.xlu0 %1000
        %1003 = vset.pattern.permute.xlu0 66
        %1004 = vperm.xlu0 %1003, %v333
        %v1005 = vpop.permute.xlu0 %1004
        %1007 = vset.pattern.permute.xlu0 66
        %1008 = vperm.xlu0 %1007, %v334
        %v1009 = vpop.permute.xlu0 %1008
        %1011 = vset.pattern.permute.xlu0 66
        %1012 = vperm.xlu0 %1011, %v335
        %v1013 = vpop.permute.xlu0 %1012
        %1015 = vset.pattern.permute.xlu0 66
        %1016 = vperm.xlu0 %1015, %v336
        %v1017 = vpop.permute.xlu0 %1016
        %1019 = vset.pattern.permute.xlu0 66
        %1020 = vperm.xlu0 %1019, %v337
        %v1021 = vpop.permute.xlu0 %1020
        %1023 = vset.pattern.permute.xlu0 66
        %1024 = vperm.xlu0 %1023, %v338
        %v1025 = vpop.permute.xlu0 %1024
        %1027 = vset.pattern.permute.xlu0 66
        %1028 = vperm.xlu0 %1027, %v339
        %v1029 = vpop.permute.xlu0 %1028
        %1031 = vset.pattern.permute.xlu0 66
        %1032 = vperm.xlu0 %1031, %v340
        %v1033 = vpop.permute.xlu0 %1032
        %1035 = vset.pattern.permute.xlu0 66
        %1036 = vperm.xlu0 %1035, %v341
        %v1037 = vpop.permute.xlu0 %1036
        %1039 = vset.pattern.permute.xlu0 66
        %1040 = vperm.xlu0 %1039, %v342
        %v1041 = vpop.permute.xlu0 %1040
        %1043 = vset.pattern.permute.xlu0 66
        %1044 = vperm.xlu0 %1043, %v343
        %v1045 = vpop.permute.xlu0 %1044
        %1047 = vset.pattern.permute.xlu0 66
        %1048 = vperm.xlu0 %1047, %v344
        %v1049 = vpop.permute.xlu0 %1048
        %1051 = vset.pattern.permute.xlu0 66
        %1052 = vperm.xlu0 %1051, %v345
        %v1053 = vpop.permute.xlu0 %1052
        %1055 = vset.pattern.permute.xlu0 66
        %1056 = vperm.xlu0 %1055, %v346
        %v1057 = vpop.permute.xlu0 %1056
        %1059 = vset.pattern.permute.xlu0 66
        %1060 = vperm.xlu0 %1059, %v347
        %v1061 = vpop.permute.xlu0 %1060
        %v1063 = vlaneseq
        %v1064 = vshrl.u32 %v1063, 7
        %v1065 = vsub.s32 0, %v1064
        %v1066 = vrot.slane %v806, %v1065
        %v1067 = vmul.f32 %v809, %v1066
        %v1068 = vmul.f32 %v813, %v1066
        %v1069 = vmul.f32 %v817, %v1066
        %v1070 = vmul.f32 %v821, %v1066
        %v1071 = vmul.f32 %v825, %v1066
        %v1072 = vmul.f32 %v829, %v1066
        %v1073 = vmul.f32 %v833, %v1066
        %v1074 = vmul.f32 %v837, %v1066
        %v1075 = vmul.f32 %v841, %v1066
        %v1076 = vmul.f32 %v845, %v1066
        %v1077 = vmul.f32 %v849, %v1066
        %v1078 = vmul.f32 %v853, %v1066
        %v1079 = vmul.f32 %v857, %v1066
        %v1080 = vmul.f32 %v861, %v1066
        %v1081 = vmul.f32 %v865, %v1066
        %v1082 = vmul.f32 %v869, %v1066
        %v1083 = vmul.f32 %v873, %v1066
        %v1084 = vmul.f32 %v877, %v1066
        %v1085 = vmul.f32 %v881, %v1066
        %v1086 = vmul.f32 %v885, %v1066
        %v1087 = vmul.f32 %v889, %v1066
        %v1088 = vmul.f32 %v893, %v1066
        %v1089 = vmul.f32 %v897, %v1066
        %v1090 = vmul.f32 %v901, %v1066
        %v1091 = vmul.f32 %v905, %v1066
        %v1092 = vmul.f32 %v909, %v1066
        %v1093 = vmul.f32 %v913, %v1066
        %v1094 = vmul.f32 %v917, %v1066
        %v1095 = vmul.f32 %v921, %v1066
        %v1096 = vmul.f32 %v925, %v1066
        %v1097 = vmul.f32 %v929, %v1066
        %v1098 = vmul.f32 %v933, %v1066
        %v1099 = vmul.f32 %v937, %v1066
        %v1100 = vmul.f32 %v941, %v1066
        %v1101 = vmul.f32 %v945, %v1066
        %v1102 = vmul.f32 %v949, %v1066
        %v1103 = vmul.f32 %v953, %v1066
        %v1104 = vmul.f32 %v957, %v1066
        %v1105 = vmul.f32 %v961, %v1066
        %v1106 = vmul.f32 %v965, %v1066
        %v1107 = vmul.f32 %v969, %v1066
        %v1108 = vmul.f32 %v973, %v1066
        %v1109 = vmul.f32 %v977, %v1066
        %v1110 = vmul.f32 %v981, %v1066
        %v1111 = vmul.f32 %v985, %v1066
        %v1112 = vmul.f32 %v989, %v1066
        %v1113 = vmul.f32 %v993, %v1066
        %v1114 = vmul.f32 %v997, %v1066
        %v1115 = vmul.f32 %v1001, %v1066
        %v1116 = vmul.f32 %v1005, %v1066
        %v1117 = vmul.f32 %v1009, %v1066
        %v1118 = vmul.f32 %v1013, %v1066
        %v1119 = vmul.f32 %v1017, %v1066
        %v1120 = vmul.f32 %v1021, %v1066
        %v1121 = vmul.f32 %v1025, %v1066
        %v1122 = vmul.f32 %v1029, %v1066
        %v1123 = vmul.f32 %v1033, %v1066
        %v1124 = vmul.f32 %v1037, %v1066
        %v1125 = vmul.f32 %v1041, %v1066
        %v1126 = vmul.f32 %v1045, %v1066
        %v1127 = vmul.f32 %v1049, %v1066
        %v1128 = vmul.f32 %v1053, %v1066
        %v1129 = vmul.f32 %v1057, %v1066
        %v1130 = vmul.f32 %v1061, %v1066
        %v1131 = vadd.f32 %v673, %v1067
        %v1132 = vadd.f32 %v674, %v1068
        %v1133 = vadd.f32 %v675, %v1069
        %v1134 = vadd.f32 %v676, %v1070
        %v1135 = vadd.f32 %v677, %v1071
        %v1136 = vadd.f32 %v678, %v1072
        %v1137 = vadd.f32 %v679, %v1073
        %v1138 = vadd.f32 %v680, %v1074
        %v1139 = vadd.f32 %v681, %v1075
        %v1140 = vadd.f32 %v682, %v1076
        %v1141 = vadd.f32 %v683, %v1077
        %v1142 = vadd.f32 %v684, %v1078
        %v1143 = vadd.f32 %v685, %v1079
        %v1144 = vadd.f32 %v686, %v1080
        %v1145 = vadd.f32 %v687, %v1081
        %v1146 = vadd.f32 %v688, %v1082
        %v1147 = vadd.f32 %v689, %v1083
        %v1148 = vadd.f32 %v690, %v1084
        %v1149 = vadd.f32 %v691, %v1085
        %v1150 = vadd.f32 %v692, %v1086
        %v1151 = vadd.f32 %v693, %v1087
        %v1152 = vadd.f32 %v694, %v1088
        %v1153 = vadd.f32 %v695, %v1089
        %v1154 = vadd.f32 %v696, %v1090
        %v1155 = vadd.f32 %v697, %v1091
        %v1156 = vadd.f32 %v698, %v1092
        %v1157 = vadd.f32 %v699, %v1093
        %v1158 = vadd.f32 %v700, %v1094
        %v1159 = vadd.f32 %v701, %v1095
        %v1160 = vadd.f32 %v702, %v1096
        %v1161 = vadd.f32 %v703, %v1097
        %v1162 = vadd.f32 %v704, %v1098
        %v1163 = vadd.f32 %v705, %v1099
        %v1164 = vadd.f32 %v706, %v1100
        %v1165 = vadd.f32 %v707, %v1101
        %v1166 = vadd.f32 %v708, %v1102
        %v1167 = vadd.f32 %v709, %v1103
        %v1168 = vadd.f32 %v710, %v1104
        %v1169 = vadd.f32 %v711, %v1105
        %v1170 = vadd.f32 %v712, %v1106
        %v1171 = vadd.f32 %v713, %v1107
        %v1172 = vadd.f32 %v714, %v1108
        %v1173 = vadd.f32 %v715, %v1109
        %v1174 = vadd.f32 %v716, %v1110
        %v1175 = vadd.f32 %v717, %v1111
        %v1176 = vadd.f32 %v718, %v1112
        %v1177 = vadd.f32 %v719, %v1113
        %v1178 = vadd.f32 %v720, %v1114
        %v1179 = vadd.f32 %v721, %v1115
        %v1180 = vadd.f32 %v722, %v1116
        %v1181 = vadd.f32 %v723, %v1117
        %v1182 = vadd.f32 %v724, %v1118
        %v1183 = vadd.f32 %v725, %v1119
        %v1184 = vadd.f32 %v726, %v1120
        %v1185 = vadd.f32 %v727, %v1121
        %v1186 = vadd.f32 %v728, %v1122
        %v1187 = vadd.f32 %v729, %v1123
        %v1188 = vadd.f32 %v730, %v1124
        %v1189 = vadd.f32 %v731, %v1125
        %v1190 = vadd.f32 %v732, %v1126
        %v1191 = vadd.f32 %v733, %v1127
        %v1192 = vadd.f32 %v734, %v1128
        %v1193 = vadd.f32 %v735, %v1129
        %v1194 = vadd.f32 %v736, %v1130
        %v1195 = vld [vmem:[%s3 + $0x1] sm:$0x1]
        %v1196 = vlaneseq
        %v1197 = vshrl.u32 %v1196, 7
        %v1198 = vsub.s32 0, %v1197
        %v1199 = vrot.slane %v1195, %v1198
        %v1200 = vmul.f32 %v809, %v1199
        %v1201 = vmul.f32 %v813, %v1199
        %v1202 = vmul.f32 %v817, %v1199
        %v1203 = vmul.f32 %v821, %v1199
        %v1204 = vmul.f32 %v825, %v1199
        %v1205 = vmul.f32 %v829, %v1199
        %v1206 = vmul.f32 %v833, %v1199
        %v1207 = vmul.f32 %v837, %v1199
        %v1208 = vmul.f32 %v841, %v1199
        %v1209 = vmul.f32 %v845, %v1199
        %v1210 = vmul.f32 %v849, %v1199
        %v1211 = vmul.f32 %v853, %v1199
        %v1212 = vmul.f32 %v857, %v1199
        %v1213 = vmul.f32 %v861, %v1199
        %v1214 = vmul.f32 %v865, %v1199
        %v1215 = vmul.f32 %v869, %v1199
        %v1216 = vmul.f32 %v873, %v1199
        %v1217 = vmul.f32 %v877, %v1199
        %v1218 = vmul.f32 %v881, %v1199
        %v1219 = vmul.f32 %v885, %v1199
        %v1220 = vmul.f32 %v889, %v1199
        %v1221 = vmul.f32 %v893, %v1199
        %v1222 = vmul.f32 %v897, %v1199
        %v1223 = vmul.f32 %v901, %v1199
        %v1224 = vmul.f32 %v905, %v1199
        %v1225 = vmul.f32 %v909, %v1199
        %v1226 = vmul.f32 %v913, %v1199
        %v1227 = vmul.f32 %v917, %v1199
        %v1228 = vmul.f32 %v921, %v1199
        %v1229 = vmul.f32 %v925, %v1199
        %v1230 = vmul.f32 %v929, %v1199
        %v1231 = vmul.f32 %v933, %v1199
        %v1232 = vmul.f32 %v937, %v1199
        %v1233 = vmul.f32 %v941, %v1199
        %v1234 = vmul.f32 %v945, %v1199
        %v1235 = vmul.f32 %v949, %v1199
        %v1236 = vmul.f32 %v953, %v1199
        %v1237 = vmul.f32 %v957, %v1199
        %v1238 = vmul.f32 %v961, %v1199
        %v1239 = vmul.f32 %v965, %v1199
        %v1240 = vmul.f32 %v969, %v1199
        %v1241 = vmul.f32 %v973, %v1199
        %v1242 = vmul.f32 %v977, %v1199
        %v1243 = vmul.f32 %v981, %v1199
        %v1244 = vmul.f32 %v985, %v1199
        %v1245 = vmul.f32 %v989, %v1199
        %v1246 = vmul.f32 %v993, %v1199
        %v1247 = vmul.f32 %v997, %v1199
        %v1248 = vmul.f32 %v1001, %v1199
        %v1249 = vmul.f32 %v1005, %v1199
        %v1250 = vmul.f32 %v1009, %v1199
        %v1251 = vmul.f32 %v1013, %v1199
        %v1252 = vmul.f32 %v1017, %v1199
        %v1253 = vmul.f32 %v1021, %v1199
        %v1254 = vmul.f32 %v1025, %v1199
        %v1255 = vmul.f32 %v1029, %v1199
        %v1256 = vmul.f32 %v1033, %v1199
        %v1257 = vmul.f32 %v1037, %v1199
        %v1258 = vmul.f32 %v1041, %v1199
        %v1259 = vmul.f32 %v1045, %v1199
        %v1260 = vmul.f32 %v1049, %v1199
        %v1261 = vmul.f32 %v1053, %v1199
        %v1262 = vmul.f32 %v1057, %v1199
        %v1263 = vmul.f32 %v1061, %v1199
        %v1264 = vadd.f32 %v742, %v1200
        %v1265 = vadd.f32 %v743, %v1201
        %v1266 = vadd.f32 %v744, %v1202
        %v1267 = vadd.f32 %v745, %v1203
        %v1268 = vadd.f32 %v746, %v1204
        %v1269 = vadd.f32 %v747, %v1205
        %v1270 = vadd.f32 %v748, %v1206
        %v1271 = vadd.f32 %v749, %v1207
        %v1272 = vadd.f32 %v750, %v1208
        %v1273 = vadd.f32 %v751, %v1209
        %v1274 = vadd.f32 %v752, %v1210
        %v1275 = vadd.f32 %v753, %v1211
        %v1276 = vadd.f32 %v754, %v1212
        %v1277 = vadd.f32 %v755, %v1213
        %v1278 = vadd.f32 %v756, %v1214
        %v1279 = vadd.f32 %v757, %v1215
        %v1280 = vadd.f32 %v758, %v1216
        %v1281 = vadd.f32 %v759, %v1217
        %v1282 = vadd.f32 %v760, %v1218
        %v1283 = vadd.f32 %v761, %v1219
        %v1284 = vadd.f32 %v762, %v1220
        %v1285 = vadd.f32 %v763, %v1221
        %v1286 = vadd.f32 %v764, %v1222
        %v1287 = vadd.f32 %v765, %v1223
        %v1288 = vadd.f32 %v766, %v1224
        %v1289 = vadd.f32 %v767, %v1225
        %v1290 = vadd.f32 %v768, %v1226
        %v1291 = vadd.f32 %v769, %v1227
        %v1292 = vadd.f32 %v770, %v1228
        %v1293 = vadd.f32 %v771, %v1229
        %v1294 = vadd.f32 %v772, %v1230
        %v1295 = vadd.f32 %v773, %v1231
        %v1296 = vadd.f32 %v774, %v1232
        %v1297 = vadd.f32 %v775, %v1233
        %v1298 = vadd.f32 %v776, %v1234
        %v1299 = vadd.f32 %v777, %v1235
        %v1300 = vadd.f32 %v778, %v1236
        %v1301 = vadd.f32 %v779, %v1237
        %v1302 = vadd.f32 %v780, %v1238
        %v1303 = vadd.f32 %v781, %v1239
        %v1304 = vadd.f32 %v782, %v1240
        %v1305 = vadd.f32 %v783, %v1241
        %v1306 = vadd.f32 %v784, %v1242
        %v1307 = vadd.f32 %v785, %v1243
        %v1308 = vadd.f32 %v786, %v1244
        %v1309 = vadd.f32 %v787, %v1245
        %v1310 = vadd.f32 %v788, %v1246
        %v1311 = vadd.f32 %v789, %v1247
        %v1312 = vadd.f32 %v790, %v1248
        %v1313 = vadd.f32 %v791, %v1249
        %v1314 = vadd.f32 %v792, %v1250
        %v1315 = vadd.f32 %v793, %v1251
        %v1316 = vadd.f32 %v794, %v1252
        %v1317 = vadd.f32 %v795, %v1253
        %v1318 = vadd.f32 %v796, %v1254
        %v1319 = vadd.f32 %v797, %v1255
        %v1320 = vadd.f32 %v798, %v1256
        %v1321 = vadd.f32 %v799, %v1257
        %v1322 = vadd.f32 %v800, %v1258
        %v1323 = vadd.f32 %v801, %v1259
        %v1324 = vadd.f32 %v802, %v1260
        %v1325 = vadd.f32 %v803, %v1261
        %v1326 = vadd.f32 %v804, %v1262
        %v1327 = vadd.f32 %v805, %v1263
        %v1328 = vld [vmem:[%s2 + $0x2] sm:$0x1]
        %1329 = vset.pattern.permute.xlu0 67
        %1330 = vperm.xlu0 %1329, %v284
        %v1331 = vpop.permute.xlu0 %1330
        %1333 = vset.pattern.permute.xlu0 67
        %1334 = vperm.xlu0 %1333, %v285
        %v1335 = vpop.permute.xlu0 %1334
        %1337 = vset.pattern.permute.xlu0 67
        %1338 = vperm.xlu0 %1337, %v286
        %v1339 = vpop.permute.xlu0 %1338
        %1341 = vset.pattern.permute.xlu0 67
        %1342 = vperm.xlu0 %1341, %v287
        %v1343 = vpop.permute.xlu0 %1342
        %1345 = vset.pattern.permute.xlu0 67
        %1346 = vperm.xlu0 %1345, %v288
        %v1347 = vpop.permute.xlu0 %1346
        %1349 = vset.pattern.permute.xlu0 67
        %1350 = vperm.xlu0 %1349, %v289
        %v1351 = vpop.permute.xlu0 %1350
        %1353 = vset.pattern.permute.xlu0 67
        %1354 = vperm.xlu0 %1353, %v290
        %v1355 = vpop.permute.xlu0 %1354
        %1357 = vset.pattern.permute.xlu0 67
        %1358 = vperm.xlu0 %1357, %v291
        %v1359 = vpop.permute.xlu0 %1358
        %1361 = vset.pattern.permute.xlu0 67
        %1362 = vperm.xlu0 %1361, %v292
        %v1363 = vpop.permute.xlu0 %1362
        %1365 = vset.pattern.permute.xlu0 67
        %1366 = vperm.xlu0 %1365, %v293
        %v1367 = vpop.permute.xlu0 %1366
        %1369 = vset.pattern.permute.xlu0 67
        %1370 = vperm.xlu0 %1369, %v294
        %v1371 = vpop.permute.xlu0 %1370
        %1373 = vset.pattern.permute.xlu0 67
        %1374 = vperm.xlu0 %1373, %v295
        %v1375 = vpop.permute.xlu0 %1374
        %1377 = vset.pattern.permute.xlu0 67
        %1378 = vperm.xlu0 %1377, %v296
        %v1379 = vpop.permute.xlu0 %1378
        %1381 = vset.pattern.permute.xlu0 67
        %1382 = vperm.xlu0 %1381, %v297
        %v1383 = vpop.permute.xlu0 %1382
        %1385 = vset.pattern.permute.xlu0 67
        %1386 = vperm.xlu0 %1385, %v298
        %v1387 = vpop.permute.xlu0 %1386
        %1389 = vset.pattern.permute.xlu0 67
        %1390 = vperm.xlu0 %1389, %v299
        %v1391 = vpop.permute.xlu0 %1390
        %1393 = vset.pattern.permute.xlu0 67
        %1394 = vperm.xlu0 %1393, %v300
        %v1395 = vpop.permute.xlu0 %1394
        %1397 = vset.pattern.permute.xlu0 67
        %1398 = vperm.xlu0 %1397, %v301
        %v1399 = vpop.permute.xlu0 %1398
        %1401 = vset.pattern.permute.xlu0 67
        %1402 = vperm.xlu0 %1401, %v302
        %v1403 = vpop.permute.xlu0 %1402
        %1405 = vset.pattern.permute.xlu0 67
        %1406 = vperm.xlu0 %1405, %v303
        %v1407 = vpop.permute.xlu0 %1406
        %1409 = vset.pattern.permute.xlu0 67
        %1410 = vperm.xlu0 %1409, %v304
        %v1411 = vpop.permute.xlu0 %1410
        %1413 = vset.pattern.permute.xlu0 67
        %1414 = vperm.xlu0 %1413, %v305
        %v1415 = vpop.permute.xlu0 %1414
        %1417 = vset.pattern.permute.xlu0 67
        %1418 = vperm.xlu0 %1417, %v306
        %v1419 = vpop.permute.xlu0 %1418
        %1421 = vset.pattern.permute.xlu0 67
        %1422 = vperm.xlu0 %1421, %v307
        %v1423 = vpop.permute.xlu0 %1422
        %1425 = vset.pattern.permute.xlu0 67
        %1426 = vperm.xlu0 %1425, %v308
        %v1427 = vpop.permute.xlu0 %1426
        %1429 = vset.pattern.permute.xlu0 67
        %1430 = vperm.xlu0 %1429, %v309
        %v1431 = vpop.permute.xlu0 %1430
        %1433 = vset.pattern.permute.xlu0 67
        %1434 = vperm.xlu0 %1433, %v310
        %v1435 = vpop.permute.xlu0 %1434
        %1437 = vset.pattern.permute.xlu0 67
        %1438 = vperm.xlu0 %1437, %v311
        %v1439 = vpop.permute.xlu0 %1438
        %1441 = vset.pattern.permute.xlu0 67
        %1442 = vperm.xlu0 %1441, %v312
        %v1443 = vpop.permute.xlu0 %1442
        %1445 = vset.pattern.permute.xlu0 67
        %1446 = vperm.xlu0 %1445, %v313
        %v1447 = vpop.permute.xlu0 %1446
        %1449 = vset.pattern.permute.xlu0 67
        %1450 = vperm.xlu0 %1449, %v314
        %v1451 = vpop.permute.xlu0 %1450
        %1453 = vset.pattern.permute.xlu0 67
        %1454 = vperm.xlu0 %1453, %v315
        %v1455 = vpop.permute.xlu0 %1454
        %1457 = vset.pattern.permute.xlu0 67
        %1458 = vperm.xlu0 %1457, %v316
        %v1459 = vpop.permute.xlu0 %1458
        %1461 = vset.pattern.permute.xlu0 67
        %1462 = vperm.xlu0 %1461, %v317
        %v1463 = vpop.permute.xlu0 %1462
        %1465 = vset.pattern.permute.xlu0 67
        %1466 = vperm.xlu0 %1465, %v318
        %v1467 = vpop.permute.xlu0 %1466
        %1469 = vset.pattern.permute.xlu0 67
        %1470 = vperm.xlu0 %1469, %v319
        %v1471 = vpop.permute.xlu0 %1470
        %1473 = vset.pattern.permute.xlu0 67
        %1474 = vperm.xlu0 %1473, %v320
        %v1475 = vpop.permute.xlu0 %1474
        %1477 = vset.pattern.permute.xlu0 67
        %1478 = vperm.xlu0 %1477, %v321
        %v1479 = vpop.permute.xlu0 %1478
        %1481 = vset.pattern.permute.xlu0 67
        %1482 = vperm.xlu0 %1481, %v322
        %v1483 = vpop.permute.xlu0 %1482
        %1485 = vset.pattern.permute.xlu0 67
        %1486 = vperm.xlu0 %1485, %v323
        %v1487 = vpop.permute.xlu0 %1486
        %1489 = vset.pattern.permute.xlu0 67
        %1490 = vperm.xlu0 %1489, %v324
        %v1491 = vpop.permute.xlu0 %1490
        %1493 = vset.pattern.permute.xlu0 67
        %1494 = vperm.xlu0 %1493, %v325
        %v1495 = vpop.permute.xlu0 %1494
        %1497 = vset.pattern.permute.xlu0 67
        %1498 = vperm.xlu0 %1497, %v326
        %v1499 = vpop.permute.xlu0 %1498
        %1501 = vset.pattern.permute.xlu0 67
        %1502 = vperm.xlu0 %1501, %v327
        %v1503 = vpop.permute.xlu0 %1502
        %1505 = vset.pattern.permute.xlu0 67
        %1506 = vperm.xlu0 %1505, %v328
        %v1507 = vpop.permute.xlu0 %1506
        %1509 = vset.pattern.permute.xlu0 67
        %1510 = vperm.xlu0 %1509, %v329
        %v1511 = vpop.permute.xlu0 %1510
        %1513 = vset.pattern.permute.xlu0 67
        %1514 = vperm.xlu0 %1513, %v330
        %v1515 = vpop.permute.xlu0 %1514
        %1517 = vset.pattern.permute.xlu0 67
        %1518 = vperm.xlu0 %1517, %v331
        %v1519 = vpop.permute.xlu0 %1518
        %1521 = vset.pattern.permute.xlu0 67
        %1522 = vperm.xlu0 %1521, %v332
        %v1523 = vpop.permute.xlu0 %1522
        %1525 = vset.pattern.permute.xlu0 67
        %1526 = vperm.xlu0 %1525, %v333
        %v1527 = vpop.permute.xlu0 %1526
        %1529 = vset.pattern.permute.xlu0 67
        %1530 = vperm.xlu0 %1529, %v334
        %v1531 = vpop.permute.xlu0 %1530
        %1533 = vset.pattern.permute.xlu0 67
        %1534 = vperm.xlu0 %1533, %v335
        %v1535 = vpop.permute.xlu0 %1534
        %1537 = vset.pattern.permute.xlu0 67
        %1538 = vperm.xlu0 %1537, %v336
        %v1539 = vpop.permute.xlu0 %1538
        %1541 = vset.pattern.permute.xlu0 67
        %1542 = vperm.xlu0 %1541, %v337
        %v1543 = vpop.permute.xlu0 %1542
        %1545 = vset.pattern.permute.xlu0 67
        %1546 = vperm.xlu0 %1545, %v338
        %v1547 = vpop.permute.xlu0 %1546
        %1549 = vset.pattern.permute.xlu0 67
        %1550 = vperm.xlu0 %1549, %v339
        %v1551 = vpop.permute.xlu0 %1550
        %1553 = vset.pattern.permute.xlu0 67
        %1554 = vperm.xlu0 %1553, %v340
        %v1555 = vpop.permute.xlu0 %1554
        %1557 = vset.pattern.permute.xlu0 67
        %1558 = vperm.xlu0 %1557, %v341
        %v1559 = vpop.permute.xlu0 %1558
        %1561 = vset.pattern.permute.xlu0 67
        %1562 = vperm.xlu0 %1561, %v342
        %v1563 = vpop.permute.xlu0 %1562
        %1565 = vset.pattern.permute.xlu0 67
        %1566 = vperm.xlu0 %1565, %v343
        %v1567 = vpop.permute.xlu0 %1566
        %1569 = vset.pattern.permute.xlu0 67
        %1570 = vperm.xlu0 %1569, %v344
        %v1571 = vpop.permute.xlu0 %1570
        %1573 = vset.pattern.permute.xlu0 67
        %1574 = vperm.xlu0 %1573, %v345
        %v1575 = vpop.permute.xlu0 %1574
        %1577 = vset.pattern.permute.xlu0 67
        %1578 = vperm.xlu0 %1577, %v346
        %v1579 = vpop.permute.xlu0 %1578
        %1581 = vset.pattern.permute.xlu0 67
        %1582 = vperm.xlu0 %1581, %v347
        %v1583 = vpop.permute.xlu0 %1582
        %v1585 = vlaneseq
        %v1586 = vshrl.u32 %v1585, 7
        %v1587 = vsub.s32 0, %v1586
        %v1588 = vrot.slane %v1328, %v1587
        %v1589 = vmul.f32 %v1331, %v1588
        %v1590 = vmul.f32 %v1335, %v1588
        %v1591 = vmul.f32 %v1339, %v1588
        %v1592 = vmul.f32 %v1343, %v1588
        %v1593 = vmul.f32 %v1347, %v1588
        %v1594 = vmul.f32 %v1351, %v1588
        %v1595 = vmul.f32 %v1355, %v1588
        %v1596 = vmul.f32 %v1359, %v1588
        %v1597 = vmul.f32 %v1363, %v1588
        %v1598 = vmul.f32 %v1367, %v1588
        %v1599 = vmul.f32 %v1371, %v1588
        %v1600 = vmul.f32 %v1375, %v1588
        %v1601 = vmul.f32 %v1379, %v1588
        %v1602 = vmul.f32 %v1383, %v1588
        %v1603 = vmul.f32 %v1387, %v1588
        %v1604 = vmul.f32 %v1391, %v1588
        %v1605 = vmul.f32 %v1395, %v1588
        %v1606 = vmul.f32 %v1399, %v1588
        %v1607 = vmul.f32 %v1403, %v1588
        %v1608 = vmul.f32 %v1407, %v1588
        %v1609 = vmul.f32 %v1411, %v1588
        %v1610 = vmul.f32 %v1415, %v1588
        %v1611 = vmul.f32 %v1419, %v1588
        %v1612 = vmul.f32 %v1423, %v1588
        %v1613 = vmul.f32 %v1427, %v1588
        %v1614 = vmul.f32 %v1431, %v1588
        %v1615 = vmul.f32 %v1435, %v1588
        %v1616 = vmul.f32 %v1439, %v1588
        %v1617 = vmul.f32 %v1443, %v1588
        %v1618 = vmul.f32 %v1447, %v1588
        %v1619 = vmul.f32 %v1451, %v1588
        %v1620 = vmul.f32 %v1455, %v1588
        %v1621 = vmul.f32 %v1459, %v1588
        %v1622 = vmul.f32 %v1463, %v1588
        %v1623 = vmul.f32 %v1467, %v1588
        %v1624 = vmul.f32 %v1471, %v1588
        %v1625 = vmul.f32 %v1475, %v1588
        %v1626 = vmul.f32 %v1479, %v1588
        %v1627 = vmul.f32 %v1483, %v1588
        %v1628 = vmul.f32 %v1487, %v1588
        %v1629 = vmul.f32 %v1491, %v1588
        %v1630 = vmul.f32 %v1495, %v1588
        %v1631 = vmul.f32 %v1499, %v1588
        %v1632 = vmul.f32 %v1503, %v1588
        %v1633 = vmul.f32 %v1507, %v1588
        %v1634 = vmul.f32 %v1511, %v1588
        %v1635 = vmul.f32 %v1515, %v1588
        %v1636 = vmul.f32 %v1519, %v1588
        %v1637 = vmul.f32 %v1523, %v1588
        %v1638 = vmul.f32 %v1527, %v1588
        %v1639 = vmul.f32 %v1531, %v1588
        %v1640 = vmul.f32 %v1535, %v1588
        %v1641 = vmul.f32 %v1539, %v1588
        %v1642 = vmul.f32 %v1543, %v1588
        %v1643 = vmul.f32 %v1547, %v1588
        %v1644 = vmul.f32 %v1551, %v1588
        %v1645 = vmul.f32 %v1555, %v1588
        %v1646 = vmul.f32 %v1559, %v1588
        %v1647 = vmul.f32 %v1563, %v1588
        %v1648 = vmul.f32 %v1567, %v1588
        %v1649 = vmul.f32 %v1571, %v1588
        %v1650 = vmul.f32 %v1575, %v1588
        %v1651 = vmul.f32 %v1579, %v1588
        %v1652 = vmul.f32 %v1583, %v1588
        %v1653 = vadd.f32 %v1131, %v1589
        %v1654 = vadd.f32 %v1132, %v1590
        %v1655 = vadd.f32 %v1133, %v1591
        %v1656 = vadd.f32 %v1134, %v1592
        %v1657 = vadd.f32 %v1135, %v1593
        %v1658 = vadd.f32 %v1136, %v1594
        %v1659 = vadd.f32 %v1137, %v1595
        %v1660 = vadd.f32 %v1138, %v1596
        %v1661 = vadd.f32 %v1139, %v1597
        %v1662 = vadd.f32 %v1140, %v1598
        %v1663 = vadd.f32 %v1141, %v1599
        %v1664 = vadd.f32 %v1142, %v1600
        %v1665 = vadd.f32 %v1143, %v1601
        %v1666 = vadd.f32 %v1144, %v1602
        %v1667 = vadd.f32 %v1145, %v1603
        %v1668 = vadd.f32 %v1146, %v1604
        %v1669 = vadd.f32 %v1147, %v1605
        %v1670 = vadd.f32 %v1148, %v1606
        %v1671 = vadd.f32 %v1149, %v1607
        %v1672 = vadd.f32 %v1150, %v1608
        %v1673 = vadd.f32 %v1151, %v1609
        %v1674 = vadd.f32 %v1152, %v1610
        %v1675 = vadd.f32 %v1153, %v1611
        %v1676 = vadd.f32 %v1154, %v1612
        %v1677 = vadd.f32 %v1155, %v1613
        %v1678 = vadd.f32 %v1156, %v1614
        %v1679 = vadd.f32 %v1157, %v1615
        %v1680 = vadd.f32 %v1158, %v1616
        %v1681 = vadd.f32 %v1159, %v1617
        %v1682 = vadd.f32 %v1160, %v1618
        %v1683 = vadd.f32 %v1161, %v1619
        %v1684 = vadd.f32 %v1162, %v1620
        %v1685 = vadd.f32 %v1163, %v1621
        %v1686 = vadd.f32 %v1164, %v1622
        %v1687 = vadd.f32 %v1165, %v1623
        %v1688 = vadd.f32 %v1166, %v1624
        %v1689 = vadd.f32 %v1167, %v1625
        %v1690 = vadd.f32 %v1168, %v1626
        %v1691 = vadd.f32 %v1169, %v1627
        %v1692 = vadd.f32 %v1170, %v1628
        %v1693 = vadd.f32 %v1171, %v1629
        %v1694 = vadd.f32 %v1172, %v1630
        %v1695 = vadd.f32 %v1173, %v1631
        %v1696 = vadd.f32 %v1174, %v1632
        %v1697 = vadd.f32 %v1175, %v1633
        %v1698 = vadd.f32 %v1176, %v1634
        %v1699 = vadd.f32 %v1177, %v1635
        %v1700 = vadd.f32 %v1178, %v1636
        %v1701 = vadd.f32 %v1179, %v1637
        %v1702 = vadd.f32 %v1180, %v1638
        %v1703 = vadd.f32 %v1181, %v1639
        %v1704 = vadd.f32 %v1182, %v1640
        %v1705 = vadd.f32 %v1183, %v1641
        %v1706 = vadd.f32 %v1184, %v1642
        %v1707 = vadd.f32 %v1185, %v1643
        %v1708 = vadd.f32 %v1186, %v1644
        %v1709 = vadd.f32 %v1187, %v1645
        %v1710 = vadd.f32 %v1188, %v1646
        %v1711 = vadd.f32 %v1189, %v1647
        %v1712 = vadd.f32 %v1190, %v1648
        %v1713 = vadd.f32 %v1191, %v1649
        %v1714 = vadd.f32 %v1192, %v1650
        %v1715 = vadd.f32 %v1193, %v1651
        %v1716 = vadd.f32 %v1194, %v1652
        %v1717 = vld [vmem:[%s3 + $0x2] sm:$0x1]
        %v1718 = vlaneseq
        %v1719 = vshrl.u32 %v1718, 7
        %v1720 = vsub.s32 0, %v1719
        %v1721 = vrot.slane %v1717, %v1720
        %v1722 = vmul.f32 %v1331, %v1721
        %v1723 = vmul.f32 %v1335, %v1721
        %v1724 = vmul.f32 %v1339, %v1721
        %v1725 = vmul.f32 %v1343, %v1721
        %v1726 = vmul.f32 %v1347, %v1721
        %v1727 = vmul.f32 %v1351, %v1721
        %v1728 = vmul.f32 %v1355, %v1721
        %v1729 = vmul.f32 %v1359, %v1721
        %v1730 = vmul.f32 %v1363, %v1721
        %v1731 = vmul.f32 %v1367, %v1721
        %v1732 = vmul.f32 %v1371, %v1721
        %v1733 = vmul.f32 %v1375, %v1721
        %v1734 = vmul.f32 %v1379, %v1721
        %v1735 = vmul.f32 %v1383, %v1721
        %v1736 = vmul.f32 %v1387, %v1721
        %v1737 = vmul.f32 %v1391, %v1721
        %v1738 = vmul.f32 %v1395, %v1721
        %v1739 = vmul.f32 %v1399, %v1721
        %v1740 = vmul.f32 %v1403, %v1721
        %v1741 = vmul.f32 %v1407, %v1721
        %v1742 = vmul.f32 %v1411, %v1721
        %v1743 = vmul.f32 %v1415, %v1721
        %v1744 = vmul.f32 %v1419, %v1721
        %v1745 = vmul.f32 %v1423, %v1721
        %v1746 = vmul.f32 %v1427, %v1721
        %v1747 = vmul.f32 %v1431, %v1721
        %v1748 = vmul.f32 %v1435, %v1721
        %v1749 = vmul.f32 %v1439, %v1721
        %v1750 = vmul.f32 %v1443, %v1721
        %v1751 = vmul.f32 %v1447, %v1721
        %v1752 = vmul.f32 %v1451, %v1721
        %v1753 = vmul.f32 %v1455, %v1721
        %v1754 = vmul.f32 %v1459, %v1721
        %v1755 = vmul.f32 %v1463, %v1721
        %v1756 = vmul.f32 %v1467, %v1721
        %v1757 = vmul.f32 %v1471, %v1721
        %v1758 = vmul.f32 %v1475, %v1721
        %v1759 = vmul.f32 %v1479, %v1721
        %v1760 = vmul.f32 %v1483, %v1721
        %v1761 = vmul.f32 %v1487, %v1721
        %v1762 = vmul.f32 %v1491, %v1721
        %v1763 = vmul.f32 %v1495, %v1721
        %v1764 = vmul.f32 %v1499, %v1721
        %v1765 = vmul.f32 %v1503, %v1721
        %v1766 = vmul.f32 %v1507, %v1721
        %v1767 = vmul.f32 %v1511, %v1721
        %v1768 = vmul.f32 %v1515, %v1721
        %v1769 = vmul.f32 %v1519, %v1721
        %v1770 = vmul.f32 %v1523, %v1721
        %v1771 = vmul.f32 %v1527, %v1721
        %v1772 = vmul.f32 %v1531, %v1721
        %v1773 = vmul.f32 %v1535, %v1721
        %v1774 = vmul.f32 %v1539, %v1721
        %v1775 = vmul.f32 %v1543, %v1721
        %v1776 = vmul.f32 %v1547, %v1721
        %v1777 = vmul.f32 %v1551, %v1721
        %v1778 = vmul.f32 %v1555, %v1721
        %v1779 = vmul.f32 %v1559, %v1721
        %v1780 = vmul.f32 %v1563, %v1721
        %v1781 = vmul.f32 %v1567, %v1721
        %v1782 = vmul.f32 %v1571, %v1721
        %v1783 = vmul.f32 %v1575, %v1721
        %v1784 = vmul.f32 %v1579, %v1721
        %v1785 = vmul.f32 %v1583, %v1721
        %v1786 = vadd.f32 %v1264, %v1722
        %v1787 = vadd.f32 %v1265, %v1723
        %v1788 = vadd.f32 %v1266, %v1724
        %v1789 = vadd.f32 %v1267, %v1725
        %v1790 = vadd.f32 %v1268, %v1726
        %v1791 = vadd.f32 %v1269, %v1727
        %v1792 = vadd.f32 %v1270, %v1728
        %v1793 = vadd.f32 %v1271, %v1729
        %v1794 = vadd.f32 %v1272, %v1730
        %v1795 = vadd.f32 %v1273, %v1731
        %v1796 = vadd.f32 %v1274, %v1732
        %v1797 = vadd.f32 %v1275, %v1733
        %v1798 = vadd.f32 %v1276, %v1734
        %v1799 = vadd.f32 %v1277, %v1735
        %v1800 = vadd.f32 %v1278, %v1736
        %v1801 = vadd.f32 %v1279, %v1737
        %v1802 = vadd.f32 %v1280, %v1738
        %v1803 = vadd.f32 %v1281, %v1739
        %v1804 = vadd.f32 %v1282, %v1740
        %v1805 = vadd.f32 %v1283, %v1741
        %v1806 = vadd.f32 %v1284, %v1742
        %v1807 = vadd.f32 %v1285, %v1743
        %v1808 = vadd.f32 %v1286, %v1744
        %v1809 = vadd.f32 %v1287, %v1745
        %v1810 = vadd.f32 %v1288, %v1746
        %v1811 = vadd.f32 %v1289, %v1747
        %v1812 = vadd.f32 %v1290, %v1748
        %v1813 = vadd.f32 %v1291, %v1749
        %v1814 = vadd.f32 %v1292, %v1750
        %v1815 = vadd.f32 %v1293, %v1751
        %v1816 = vadd.f32 %v1294, %v1752
        %v1817 = vadd.f32 %v1295, %v1753
        %v1818 = vadd.f32 %v1296, %v1754
        %v1819 = vadd.f32 %v1297, %v1755
        %v1820 = vadd.f32 %v1298, %v1756
        %v1821 = vadd.f32 %v1299, %v1757
        %v1822 = vadd.f32 %v1300, %v1758
        %v1823 = vadd.f32 %v1301, %v1759
        %v1824 = vadd.f32 %v1302, %v1760
        %v1825 = vadd.f32 %v1303, %v1761
        %v1826 = vadd.f32 %v1304, %v1762
        %v1827 = vadd.f32 %v1305, %v1763
        %v1828 = vadd.f32 %v1306, %v1764
        %v1829 = vadd.f32 %v1307, %v1765
        %v1830 = vadd.f32 %v1308, %v1766
        %v1831 = vadd.f32 %v1309, %v1767
        %v1832 = vadd.f32 %v1310, %v1768
        %v1833 = vadd.f32 %v1311, %v1769
        %v1834 = vadd.f32 %v1312, %v1770
        %v1835 = vadd.f32 %v1313, %v1771
        %v1836 = vadd.f32 %v1314, %v1772
        %v1837 = vadd.f32 %v1315, %v1773
        %v1838 = vadd.f32 %v1316, %v1774
        %v1839 = vadd.f32 %v1317, %v1775
        %v1840 = vadd.f32 %v1318, %v1776
        %v1841 = vadd.f32 %v1319, %v1777
        %v1842 = vadd.f32 %v1320, %v1778
        %v1843 = vadd.f32 %v1321, %v1779
        %v1844 = vadd.f32 %v1322, %v1780
        %v1845 = vadd.f32 %v1323, %v1781
        %v1846 = vadd.f32 %v1324, %v1782
        %v1847 = vadd.f32 %v1325, %v1783
        %v1848 = vadd.f32 %v1326, %v1784
        %v1849 = vadd.f32 %v1327, %v1785
        %1850 = vset.pattern.permute.xlu0 64
        %1851 = vperm.xlu0 %1850, %v284
        %v1852 = vpop.permute.xlu0 %1851
        %1854 = vset.pattern.permute.xlu0 64
        %1855 = vperm.xlu0 %1854, %v285
        %v1856 = vpop.permute.xlu0 %1855
        %1858 = vset.pattern.permute.xlu0 64
        %1859 = vperm.xlu0 %1858, %v286
        %v1860 = vpop.permute.xlu0 %1859
        %1862 = vset.pattern.permute.xlu0 64
        %1863 = vperm.xlu0 %1862, %v287
        %v1864 = vpop.permute.xlu0 %1863
        %1866 = vset.pattern.permute.xlu0 64
        %1867 = vperm.xlu0 %1866, %v288
        %v1868 = vpop.permute.xlu0 %1867
        %1870 = vset.pattern.permute.xlu0 64
        %1871 = vperm.xlu0 %1870, %v289
        %v1872 = vpop.permute.xlu0 %1871
        %1874 = vset.pattern.permute.xlu0 64
        %1875 = vperm.xlu0 %1874, %v290
        %v1876 = vpop.permute.xlu0 %1875
        %1878 = vset.pattern.permute.xlu0 64
        %1879 = vperm.xlu0 %1878, %v291
        %v1880 = vpop.permute.xlu0 %1879
        %1882 = vset.pattern.permute.xlu0 64
        %1883 = vperm.xlu0 %1882, %v292
        %v1884 = vpop.permute.xlu0 %1883
        %1886 = vset.pattern.permute.xlu0 64
        %1887 = vperm.xlu0 %1886, %v293
        %v1888 = vpop.permute.xlu0 %1887
        %1890 = vset.pattern.permute.xlu0 64
        %1891 = vperm.xlu0 %1890, %v294
        %v1892 = vpop.permute.xlu0 %1891
        %1894 = vset.pattern.permute.xlu0 64
        %1895 = vperm.xlu0 %1894, %v295
        %v1896 = vpop.permute.xlu0 %1895
        %1898 = vset.pattern.permute.xlu0 64
        %1899 = vperm.xlu0 %1898, %v296
        %v1900 = vpop.permute.xlu0 %1899
        %1902 = vset.pattern.permute.xlu0 64
        %1903 = vperm.xlu0 %1902, %v297
        %v1904 = vpop.permute.xlu0 %1903
        %1906 = vset.pattern.permute.xlu0 64
        %1907 = vperm.xlu0 %1906, %v298
        %v1908 = vpop.permute.xlu0 %1907
        %1910 = vset.pattern.permute.xlu0 64
        %1911 = vperm.xlu0 %1910, %v299
        %v1912 = vpop.permute.xlu0 %1911
        %1914 = vset.pattern.permute.xlu0 64
        %1915 = vperm.xlu0 %1914, %v300
        %v1916 = vpop.permute.xlu0 %1915
        %1918 = vset.pattern.permute.xlu0 64
        %1919 = vperm.xlu0 %1918, %v301
        %v1920 = vpop.permute.xlu0 %1919
        %1922 = vset.pattern.permute.xlu0 64
        %1923 = vperm.xlu0 %1922, %v302
        %v1924 = vpop.permute.xlu0 %1923
        %1926 = vset.pattern.permute.xlu0 64
        %1927 = vperm.xlu0 %1926, %v303
        %v1928 = vpop.permute.xlu0 %1927
        %1930 = vset.pattern.permute.xlu0 64
        %1931 = vperm.xlu0 %1930, %v304
        %v1932 = vpop.permute.xlu0 %1931
        %1934 = vset.pattern.permute.xlu0 64
        %1935 = vperm.xlu0 %1934, %v305
        %v1936 = vpop.permute.xlu0 %1935
        %1938 = vset.pattern.permute.xlu0 64
        %1939 = vperm.xlu0 %1938, %v306
        %v1940 = vpop.permute.xlu0 %1939
        %1942 = vset.pattern.permute.xlu0 64
        %1943 = vperm.xlu0 %1942, %v307
        %v1944 = vpop.permute.xlu0 %1943
        %1946 = vset.pattern.permute.xlu0 64
        %1947 = vperm.xlu0 %1946, %v308
        %v1948 = vpop.permute.xlu0 %1947
        %1950 = vset.pattern.permute.xlu0 64
        %1951 = vperm.xlu0 %1950, %v309
        %v1952 = vpop.permute.xlu0 %1951
        %1954 = vset.pattern.permute.xlu0 64
        %1955 = vperm.xlu0 %1954, %v310
        %v1956 = vpop.permute.xlu0 %1955
        %1958 = vset.pattern.permute.xlu0 64
        %1959 = vperm.xlu0 %1958, %v311
        %v1960 = vpop.permute.xlu0 %1959
        %1962 = vset.pattern.permute.xlu0 64
        %1963 = vperm.xlu0 %1962, %v312
        %v1964 = vpop.permute.xlu0 %1963
        %1966 = vset.pattern.permute.xlu0 64
        %1967 = vperm.xlu0 %1966, %v313
        %v1968 = vpop.permute.xlu0 %1967
        %1970 = vset.pattern.permute.xlu0 64
        %1971 = vperm.xlu0 %1970, %v314
        %v1972 = vpop.permute.xlu0 %1971
        %1974 = vset.pattern.permute.xlu0 64
        %1975 = vperm.xlu0 %1974, %v315
        %v1976 = vpop.permute.xlu0 %1975
        %1978 = vset.pattern.permute.xlu0 64
        %1979 = vperm.xlu0 %1978, %v316
        %v1980 = vpop.permute.xlu0 %1979
        %1982 = vset.pattern.permute.xlu0 64
        %1983 = vperm.xlu0 %1982, %v317
        %v1984 = vpop.permute.xlu0 %1983
        %1986 = vset.pattern.permute.xlu0 64
        %1987 = vperm.xlu0 %1986, %v318
        %v1988 = vpop.permute.xlu0 %1987
        %1990 = vset.pattern.permute.xlu0 64
        %1991 = vperm.xlu0 %1990, %v319
        %v1992 = vpop.permute.xlu0 %1991
        %1994 = vset.pattern.permute.xlu0 64
        %1995 = vperm.xlu0 %1994, %v320
        %v1996 = vpop.permute.xlu0 %1995
        %1998 = vset.pattern.permute.xlu0 64
        %1999 = vperm.xlu0 %1998, %v321
        %v2000 = vpop.permute.xlu0 %1999
        %2002 = vset.pattern.permute.xlu0 64
        %2003 = vperm.xlu0 %2002, %v322
        %v2004 = vpop.permute.xlu0 %2003
        %2006 = vset.pattern.permute.xlu0 64
        %2007 = vperm.xlu0 %2006, %v323
        %v2008 = vpop.permute.xlu0 %2007
        %2010 = vset.pattern.permute.xlu0 64
        %2011 = vperm.xlu0 %2010, %v324
        %v2012 = vpop.permute.xlu0 %2011
        %2014 = vset.pattern.permute.xlu0 64
        %2015 = vperm.xlu0 %2014, %v325
        %v2016 = vpop.permute.xlu0 %2015
        %2018 = vset.pattern.permute.xlu0 64
        %2019 = vperm.xlu0 %2018, %v326
        %v2020 = vpop.permute.xlu0 %2019
        %2022 = vset.pattern.permute.xlu0 64
        %2023 = vperm.xlu0 %2022, %v327
        %v2024 = vpop.permute.xlu0 %2023
        %2026 = vset.pattern.permute.xlu0 64
        %2027 = vperm.xlu0 %2026, %v328
        %v2028 = vpop.permute.xlu0 %2027
        %2030 = vset.pattern.permute.xlu0 64
        %2031 = vperm.xlu0 %2030, %v329
        %v2032 = vpop.permute.xlu0 %2031
        %2034 = vset.pattern.permute.xlu0 64
        %2035 = vperm.xlu0 %2034, %v330
        %v2036 = vpop.permute.xlu0 %2035
        %2038 = vset.pattern.permute.xlu0 64
        %2039 = vperm.xlu0 %2038, %v331
        %v2040 = vpop.permute.xlu0 %2039
        %2042 = vset.pattern.permute.xlu0 64
        %2043 = vperm.xlu0 %2042, %v332
        %v2044 = vpop.permute.xlu0 %2043
        %2046 = vset.pattern.permute.xlu0 64
        %2047 = vperm.xlu0 %2046, %v333
        %v2048 = vpop.permute.xlu0 %2047
        %2050 = vset.pattern.permute.xlu0 64
        %2051 = vperm.xlu0 %2050, %v334
        %v2052 = vpop.permute.xlu0 %2051
        %2054 = vset.pattern.permute.xlu0 64
        %2055 = vperm.xlu0 %2054, %v335
        %v2056 = vpop.permute.xlu0 %2055
        %2058 = vset.pattern.permute.xlu0 64
        %2059 = vperm.xlu0 %2058, %v336
        %v2060 = vpop.permute.xlu0 %2059
        %2062 = vset.pattern.permute.xlu0 64
        %2063 = vperm.xlu0 %2062, %v337
        %v2064 = vpop.permute.xlu0 %2063
        %2066 = vset.pattern.permute.xlu0 64
        %2067 = vperm.xlu0 %2066, %v338
        %v2068 = vpop.permute.xlu0 %2067
        %2070 = vset.pattern.permute.xlu0 64
        %2071 = vperm.xlu0 %2070, %v339
        %v2072 = vpop.permute.xlu0 %2071
        %2074 = vset.pattern.permute.xlu0 64
        %2075 = vperm.xlu0 %2074, %v340
        %v2076 = vpop.permute.xlu0 %2075
        %2078 = vset.pattern.permute.xlu0 64
        %2079 = vperm.xlu0 %2078, %v341
        %v2080 = vpop.permute.xlu0 %2079
        %2082 = vset.pattern.permute.xlu0 64
        %2083 = vperm.xlu0 %2082, %v342
        %v2084 = vpop.permute.xlu0 %2083
        %2086 = vset.pattern.permute.xlu0 64
        %2087 = vperm.xlu0 %2086, %v343
        %v2088 = vpop.permute.xlu0 %2087
        %2090 = vset.pattern.permute.xlu0 64
        %2091 = vperm.xlu0 %2090, %v344
        %v2092 = vpop.permute.xlu0 %2091
        %2094 = vset.pattern.permute.xlu0 64
        %2095 = vperm.xlu0 %2094, %v345
        %v2096 = vpop.permute.xlu0 %2095
        %2098 = vset.pattern.permute.xlu0 64
        %2099 = vperm.xlu0 %2098, %v346
        %v2100 = vpop.permute.xlu0 %2099
        %2102 = vset.pattern.permute.xlu0 64
        %2103 = vperm.xlu0 %2102, %v347
        %v2104 = vpop.permute.xlu0 %2103
        %v2106 = vsub.f32 %v1852, %v1653
        %v2107 = vsub.f32 %v1856, %v1654
        %v2108 = vsub.f32 %v1860, %v1655
        %v2109 = vsub.f32 %v1864, %v1656
        %v2110 = vsub.f32 %v1868, %v1657
        %v2111 = vsub.f32 %v1872, %v1658
        %v2112 = vsub.f32 %v1876, %v1659
        %v2113 = vsub.f32 %v1880, %v1660
        %v2114 = vsub.f32 %v1884, %v1661
        %v2115 = vsub.f32 %v1888, %v1662
        %v2116 = vsub.f32 %v1892, %v1663
        %v2117 = vsub.f32 %v1896, %v1664
        %v2118 = vsub.f32 %v1900, %v1665
        %v2119 = vsub.f32 %v1904, %v1666
        %v2120 = vsub.f32 %v1908, %v1667
        %v2121 = vsub.f32 %v1912, %v1668
        %v2122 = vsub.f32 %v1916, %v1669
        %v2123 = vsub.f32 %v1920, %v1670
        %v2124 = vsub.f32 %v1924, %v1671
        %v2125 = vsub.f32 %v1928, %v1672
        %v2126 = vsub.f32 %v1932, %v1673
        %v2127 = vsub.f32 %v1936, %v1674
        %v2128 = vsub.f32 %v1940, %v1675
        %v2129 = vsub.f32 %v1944, %v1676
        %v2130 = vsub.f32 %v1948, %v1677
        %v2131 = vsub.f32 %v1952, %v1678
        %v2132 = vsub.f32 %v1956, %v1679
        %v2133 = vsub.f32 %v1960, %v1680
        %v2134 = vsub.f32 %v1964, %v1681
        %v2135 = vsub.f32 %v1968, %v1682
        %v2136 = vsub.f32 %v1972, %v1683
        %v2137 = vsub.f32 %v1976, %v1684
        %v2138 = vsub.f32 %v1980, %v1685
        %v2139 = vsub.f32 %v1984, %v1686
        %v2140 = vsub.f32 %v1988, %v1687
        %v2141 = vsub.f32 %v1992, %v1688
        %v2142 = vsub.f32 %v1996, %v1689
        %v2143 = vsub.f32 %v2000, %v1690
        %v2144 = vsub.f32 %v2004, %v1691
        %v2145 = vsub.f32 %v2008, %v1692
        %v2146 = vsub.f32 %v2012, %v1693
        %v2147 = vsub.f32 %v2016, %v1694
        %v2148 = vsub.f32 %v2020, %v1695
        %v2149 = vsub.f32 %v2024, %v1696
        %v2150 = vsub.f32 %v2028, %v1697
        %v2151 = vsub.f32 %v2032, %v1698
        %v2152 = vsub.f32 %v2036, %v1699
        %v2153 = vsub.f32 %v2040, %v1700
        %v2154 = vsub.f32 %v2044, %v1701
        %v2155 = vsub.f32 %v2048, %v1702
        %v2156 = vsub.f32 %v2052, %v1703
        %v2157 = vsub.f32 %v2056, %v1704
        %v2158 = vsub.f32 %v2060, %v1705
        %v2159 = vsub.f32 %v2064, %v1706
        %v2160 = vsub.f32 %v2068, %v1707
        %v2161 = vsub.f32 %v2072, %v1708
        %v2162 = vsub.f32 %v2076, %v1709
        %v2163 = vsub.f32 %v2080, %v1710
        %v2164 = vsub.f32 %v2084, %v1711
        %v2165 = vsub.f32 %v2088, %v1712
        %v2166 = vsub.f32 %v2092, %v1713
        %v2167 = vsub.f32 %v2096, %v1714
        %v2168 = vsub.f32 %v2100, %v1715
        %v2169 = vsub.f32 %v2104, %v1716
        %v2170 = vmul.f32 %v1786, %v2106
        %v2171 = vmul.f32 %v1787, %v2107
        %v2172 = vmul.f32 %v1788, %v2108
        %v2173 = vmul.f32 %v1789, %v2109
        %v2174 = vmul.f32 %v1790, %v2110
        %v2175 = vmul.f32 %v1791, %v2111
        %v2176 = vmul.f32 %v1792, %v2112
        %v2177 = vmul.f32 %v1793, %v2113
        %v2178 = vmul.f32 %v1794, %v2114
        %v2179 = vmul.f32 %v1795, %v2115
        %v2180 = vmul.f32 %v1796, %v2116
        %v2181 = vmul.f32 %v1797, %v2117
        %v2182 = vmul.f32 %v1798, %v2118
        %v2183 = vmul.f32 %v1799, %v2119
        %v2184 = vmul.f32 %v1800, %v2120
        %v2185 = vmul.f32 %v1801, %v2121
        %v2186 = vmul.f32 %v1802, %v2122
        %v2187 = vmul.f32 %v1803, %v2123
        %v2188 = vmul.f32 %v1804, %v2124
        %v2189 = vmul.f32 %v1805, %v2125
        %v2190 = vmul.f32 %v1806, %v2126
        %v2191 = vmul.f32 %v1807, %v2127
        %v2192 = vmul.f32 %v1808, %v2128
        %v2193 = vmul.f32 %v1809, %v2129
        %v2194 = vmul.f32 %v1810, %v2130
        %v2195 = vmul.f32 %v1811, %v2131
        %v2196 = vmul.f32 %v1812, %v2132
        %v2197 = vmul.f32 %v1813, %v2133
        %v2198 = vmul.f32 %v1814, %v2134
        %v2199 = vmul.f32 %v1815, %v2135
        %v2200 = vmul.f32 %v1816, %v2136
        %v2201 = vmul.f32 %v1817, %v2137
        %v2202 = vmul.f32 %v1818, %v2138
        %v2203 = vmul.f32 %v1819, %v2139
        %v2204 = vmul.f32 %v1820, %v2140
        %v2205 = vmul.f32 %v1821, %v2141
        %v2206 = vmul.f32 %v1822, %v2142
        %v2207 = vmul.f32 %v1823, %v2143
        %v2208 = vmul.f32 %v1824, %v2144
        %v2209 = vmul.f32 %v1825, %v2145
        %v2210 = vmul.f32 %v1826, %v2146
        %v2211 = vmul.f32 %v1827, %v2147
        %v2212 = vmul.f32 %v1828, %v2148
        %v2213 = vmul.f32 %v1829, %v2149
        %v2214 = vmul.f32 %v1830, %v2150
        %v2215 = vmul.f32 %v1831, %v2151
        %v2216 = vmul.f32 %v1832, %v2152
        %v2217 = vmul.f32 %v1833, %v2153
        %v2218 = vmul.f32 %v1834, %v2154
        %v2219 = vmul.f32 %v1835, %v2155
        %v2220 = vmul.f32 %v1836, %v2156
        %v2221 = vmul.f32 %v1837, %v2157
        %v2222 = vmul.f32 %v1838, %v2158
        %v2223 = vmul.f32 %v1839, %v2159
        %v2224 = vmul.f32 %v1840, %v2160
        %v2225 = vmul.f32 %v1841, %v2161
        %v2226 = vmul.f32 %v1842, %v2162
        %v2227 = vmul.f32 %v1843, %v2163
        %v2228 = vmul.f32 %v1844, %v2164
        %v2229 = vmul.f32 %v1845, %v2165
        %v2230 = vmul.f32 %v1846, %v2166
        %v2231 = vmul.f32 %v1847, %v2167
        %v2232 = vmul.f32 %v1848, %v2168
        %v2233 = vmul.f32 %v1849, %v2169
        %v2234 = vmul.f32 %v2170, %v2106
        %v2235 = vmul.f32 %v2171, %v2107
        %v2236 = vmul.f32 %v2172, %v2108
        %v2237 = vmul.f32 %v2173, %v2109
        %v2238 = vmul.f32 %v2174, %v2110
        %v2239 = vmul.f32 %v2175, %v2111
        %v2240 = vmul.f32 %v2176, %v2112
        %v2241 = vmul.f32 %v2177, %v2113
        %v2242 = vmul.f32 %v2178, %v2114
        %v2243 = vmul.f32 %v2179, %v2115
        %v2244 = vmul.f32 %v2180, %v2116
        %v2245 = vmul.f32 %v2181, %v2117
        %v2246 = vmul.f32 %v2182, %v2118
        %v2247 = vmul.f32 %v2183, %v2119
        %v2248 = vmul.f32 %v2184, %v2120
        %v2249 = vmul.f32 %v2185, %v2121
        %v2250 = vmul.f32 %v2186, %v2122
        %v2251 = vmul.f32 %v2187, %v2123
        %v2252 = vmul.f32 %v2188, %v2124
        %v2253 = vmul.f32 %v2189, %v2125
        %v2254 = vmul.f32 %v2190, %v2126
        %v2255 = vmul.f32 %v2191, %v2127
        %v2256 = vmul.f32 %v2192, %v2128
        %v2257 = vmul.f32 %v2193, %v2129
        %v2258 = vmul.f32 %v2194, %v2130
        %v2259 = vmul.f32 %v2195, %v2131
        %v2260 = vmul.f32 %v2196, %v2132
        %v2261 = vmul.f32 %v2197, %v2133
        %v2262 = vmul.f32 %v2198, %v2134
        %v2263 = vmul.f32 %v2199, %v2135
        %v2264 = vmul.f32 %v2200, %v2136
        %v2265 = vmul.f32 %v2201, %v2137
        %v2266 = vmul.f32 %v2202, %v2138
        %v2267 = vmul.f32 %v2203, %v2139
        %v2268 = vmul.f32 %v2204, %v2140
        %v2269 = vmul.f32 %v2205, %v2141
        %v2270 = vmul.f32 %v2206, %v2142
        %v2271 = vmul.f32 %v2207, %v2143
        %v2272 = vmul.f32 %v2208, %v2144
        %v2273 = vmul.f32 %v2209, %v2145
        %v2274 = vmul.f32 %v2210, %v2146
        %v2275 = vmul.f32 %v2211, %v2147
        %v2276 = vmul.f32 %v2212, %v2148
        %v2277 = vmul.f32 %v2213, %v2149
        %v2278 = vmul.f32 %v2214, %v2150
        %v2279 = vmul.f32 %v2215, %v2151
        %v2280 = vmul.f32 %v2216, %v2152
        %v2281 = vmul.f32 %v2217, %v2153
        %v2282 = vmul.f32 %v2218, %v2154
        %v2283 = vmul.f32 %v2219, %v2155
        %v2284 = vmul.f32 %v2220, %v2156
        %v2285 = vmul.f32 %v2221, %v2157
        %v2286 = vmul.f32 %v2222, %v2158
        %v2287 = vmul.f32 %v2223, %v2159
        %v2288 = vmul.f32 %v2224, %v2160
        %v2289 = vmul.f32 %v2225, %v2161
        %v2290 = vmul.f32 %v2226, %v2162
        %v2291 = vmul.f32 %v2227, %v2163
        %v2292 = vmul.f32 %v2228, %v2164
        %v2293 = vmul.f32 %v2229, %v2165
        %v2294 = vmul.f32 %v2230, %v2166
        %v2295 = vmul.f32 %v2231, %v2167
        %v2296 = vmul.f32 %v2232, %v2168
        %v2297 = vmul.f32 %v2233, %v2169
        %v2298 = vmul.f32 %v2234, 1.442695
        %v2299 = vpow.pop %v2298
        %v2300 = vmul.f32 %v2235, 1.442695
        %v2301 = vpow.pop %v2300
        %v2302 = vmul.f32 %v2236, 1.442695
        %v2303 = vpow.pop %v2302
        %v2304 = vmul.f32 %v2237, 1.442695
        %v2305 = vpow.pop %v2304
        %v2306 = vmul.f32 %v2238, 1.442695
        %v2307 = vpow.pop %v2306
        %v2308 = vmul.f32 %v2239, 1.442695
        %v2309 = vpow.pop %v2308
        %v2310 = vmul.f32 %v2240, 1.442695
        %v2311 = vpow.pop %v2310
        %v2312 = vmul.f32 %v2241, 1.442695
        %v2313 = vpow.pop %v2312
        %v2314 = vmul.f32 %v2242, 1.442695
        %v2315 = vpow.pop %v2314
        %v2316 = vmul.f32 %v2243, 1.442695
        %v2317 = vpow.pop %v2316
        %v2318 = vmul.f32 %v2244, 1.442695
        %v2319 = vpow.pop %v2318
        %v2320 = vmul.f32 %v2245, 1.442695
        %v2321 = vpow.pop %v2320
        %v2322 = vmul.f32 %v2246, 1.442695
        %v2323 = vpow.pop %v2322
        %v2324 = vmul.f32 %v2247, 1.442695
        %v2325 = vpow.pop %v2324
        %v2326 = vmul.f32 %v2248, 1.442695
        %v2327 = vpow.pop %v2326
        %v2328 = vmul.f32 %v2249, 1.442695
        %v2329 = vpow.pop %v2328
        %v2330 = vmul.f32 %v2250, 1.442695
        %v2331 = vpow.pop %v2330
        %v2332 = vmul.f32 %v2251, 1.442695
        %v2333 = vpow.pop %v2332
        %v2334 = vmul.f32 %v2252, 1.442695
        %v2335 = vpow.pop %v2334
        %v2336 = vmul.f32 %v2253, 1.442695
        %v2337 = vpow.pop %v2336
        %v2338 = vmul.f32 %v2254, 1.442695
        %v2339 = vpow.pop %v2338
        %v2340 = vmul.f32 %v2255, 1.442695
        %v2341 = vpow.pop %v2340
        %v2342 = vmul.f32 %v2256, 1.442695
        %v2343 = vpow.pop %v2342
        %v2344 = vmul.f32 %v2257, 1.442695
        %v2345 = vpow.pop %v2344
        %v2346 = vmul.f32 %v2258, 1.442695
        %v2347 = vpow.pop %v2346
        %v2348 = vmul.f32 %v2259, 1.442695
        %v2349 = vpow.pop %v2348
        %v2350 = vmul.f32 %v2260, 1.442695
        %v2351 = vpow.pop %v2350
        %v2352 = vmul.f32 %v2261, 1.442695
        %v2353 = vpow.pop %v2352
        %v2354 = vmul.f32 %v2262, 1.442695
        %v2355 = vpow.pop %v2354
        %v2356 = vmul.f32 %v2263, 1.442695
        %v2357 = vpow.pop %v2356
        %v2358 = vmul.f32 %v2264, 1.442695
        %v2359 = vpow.pop %v2358
        %v2360 = vmul.f32 %v2265, 1.442695
        %v2361 = vpow.pop %v2360
        %v2362 = vmul.f32 %v2266, 1.442695
        %v2363 = vpow.pop %v2362
        %v2364 = vmul.f32 %v2267, 1.442695
        %v2365 = vpow.pop %v2364
        %v2366 = vmul.f32 %v2268, 1.442695
        %v2367 = vpow.pop %v2366
        %v2368 = vmul.f32 %v2269, 1.442695
        %v2369 = vpow.pop %v2368
        %v2370 = vmul.f32 %v2270, 1.442695
        %v2371 = vpow.pop %v2370
        %v2372 = vmul.f32 %v2271, 1.442695
        %v2373 = vpow.pop %v2372
        %v2374 = vmul.f32 %v2272, 1.442695
        %v2375 = vpow.pop %v2374
        %v2376 = vmul.f32 %v2273, 1.442695
        %v2377 = vpow.pop %v2376
        %v2378 = vmul.f32 %v2274, 1.442695
        %v2379 = vpow.pop %v2378
        %v2380 = vmul.f32 %v2275, 1.442695
        %v2381 = vpow.pop %v2380
        %v2382 = vmul.f32 %v2276, 1.442695
        %v2383 = vpow.pop %v2382
        %v2384 = vmul.f32 %v2277, 1.442695
        %v2385 = vpow.pop %v2384
        %v2386 = vmul.f32 %v2278, 1.442695
        %v2387 = vpow.pop %v2386
        %v2388 = vmul.f32 %v2279, 1.442695
        %v2389 = vpow.pop %v2388
        %v2390 = vmul.f32 %v2280, 1.442695
        %v2391 = vpow.pop %v2390
        %v2392 = vmul.f32 %v2281, 1.442695
        %v2393 = vpow.pop %v2392
        %v2394 = vmul.f32 %v2282, 1.442695
        %v2395 = vpow.pop %v2394
        %v2396 = vmul.f32 %v2283, 1.442695
        %v2397 = vpow.pop %v2396
        %v2398 = vmul.f32 %v2284, 1.442695
        %v2399 = vpow.pop %v2398
        %v2400 = vmul.f32 %v2285, 1.442695
        %v2401 = vpow.pop %v2400
        %v2402 = vmul.f32 %v2286, 1.442695
        %v2403 = vpow.pop %v2402
        %v2404 = vmul.f32 %v2287, 1.442695
        %v2405 = vpow.pop %v2404
        %v2406 = vmul.f32 %v2288, 1.442695
        %v2407 = vpow.pop %v2406
        %v2408 = vmul.f32 %v2289, 1.442695
        %v2409 = vpow.pop %v2408
        %v2410 = vmul.f32 %v2290, 1.442695
        %v2411 = vpow.pop %v2410
        %v2412 = vmul.f32 %v2291, 1.442695
        %v2413 = vpow.pop %v2412
        %v2414 = vmul.f32 %v2292, 1.442695
        %v2415 = vpow.pop %v2414
        %v2416 = vmul.f32 %v2293, 1.442695
        %v2417 = vpow.pop %v2416
        %v2418 = vmul.f32 %v2294, 1.442695
        %v2419 = vpow.pop %v2418
        %v2420 = vmul.f32 %v2295, 1.442695
        %v2421 = vpow.pop %v2420
        %v2422 = vmul.f32 %v2296, 1.442695
        %v2423 = vpow.pop %v2422
        %v2424 = vmul.f32 %v2297, 1.442695
        %v2425 = vpow.pop %v2424
        %2490 = vrot.lane.b32.xlu0 %v2299, 16
        %v2491 = vpop.permute.xlu0 %2490
        %2492 = vrot.lane.b32.xlu0 %v2301, 16
        %v2493 = vpop.permute.xlu0 %2492
        %2494 = vrot.lane.b32.xlu0 %v2303, 16
        %v2495 = vpop.permute.xlu0 %2494
        %2496 = vrot.lane.b32.xlu0 %v2305, 16
        %v2497 = vpop.permute.xlu0 %2496
        %2498 = vrot.lane.b32.xlu0 %v2307, 16
        %v2499 = vpop.permute.xlu0 %2498
        %2500 = vrot.lane.b32.xlu0 %v2309, 16
        %v2501 = vpop.permute.xlu0 %2500
        %2502 = vrot.lane.b32.xlu0 %v2311, 16
        %v2503 = vpop.permute.xlu0 %2502
        %2504 = vrot.lane.b32.xlu0 %v2313, 16
        %v2505 = vpop.permute.xlu0 %2504
        %2506 = vrot.lane.b32.xlu0 %v2315, 16
        %v2507 = vpop.permute.xlu0 %2506
        %2508 = vrot.lane.b32.xlu0 %v2317, 16
        %v2509 = vpop.permute.xlu0 %2508
        %2510 = vrot.lane.b32.xlu0 %v2319, 16
        %v2511 = vpop.permute.xlu0 %2510
        %2512 = vrot.lane.b32.xlu0 %v2321, 16
        %v2513 = vpop.permute.xlu0 %2512
        %2514 = vrot.lane.b32.xlu0 %v2323, 16
        %v2515 = vpop.permute.xlu0 %2514
        %2516 = vrot.lane.b32.xlu0 %v2325, 16
        %v2517 = vpop.permute.xlu0 %2516
        %2518 = vrot.lane.b32.xlu0 %v2327, 16
        %v2519 = vpop.permute.xlu0 %2518
        %2520 = vrot.lane.b32.xlu0 %v2329, 16
        %v2521 = vpop.permute.xlu0 %2520
        %2522 = vrot.lane.b32.xlu0 %v2331, 16
        %v2523 = vpop.permute.xlu0 %2522
        %2524 = vrot.lane.b32.xlu0 %v2333, 16
        %v2525 = vpop.permute.xlu0 %2524
        %2526 = vrot.lane.b32.xlu0 %v2335, 16
        %v2527 = vpop.permute.xlu0 %2526
        %2528 = vrot.lane.b32.xlu0 %v2337, 16
        %v2529 = vpop.permute.xlu0 %2528
        %2530 = vrot.lane.b32.xlu0 %v2339, 16
        %v2531 = vpop.permute.xlu0 %2530
        %2532 = vrot.lane.b32.xlu0 %v2341, 16
        %v2533 = vpop.permute.xlu0 %2532
        %2534 = vrot.lane.b32.xlu0 %v2343, 16
        %v2535 = vpop.permute.xlu0 %2534
        %2536 = vrot.lane.b32.xlu0 %v2345, 16
        %v2537 = vpop.permute.xlu0 %2536
        %2538 = vrot.lane.b32.xlu0 %v2347, 16
        %v2539 = vpop.permute.xlu0 %2538
        %2540 = vrot.lane.b32.xlu0 %v2349, 16
        %v2541 = vpop.permute.xlu0 %2540
        %2542 = vrot.lane.b32.xlu0 %v2351, 16
        %v2543 = vpop.permute.xlu0 %2542
        %2544 = vrot.lane.b32.xlu0 %v2353, 16
        %v2545 = vpop.permute.xlu0 %2544
        %2546 = vrot.lane.b32.xlu0 %v2355, 16
        %v2547 = vpop.permute.xlu0 %2546
        %2548 = vrot.lane.b32.xlu0 %v2357, 16
        %v2549 = vpop.permute.xlu0 %2548
        %2550 = vrot.lane.b32.xlu0 %v2359, 16
        %v2551 = vpop.permute.xlu0 %2550
        %2552 = vrot.lane.b32.xlu0 %v2361, 16
        %v2553 = vpop.permute.xlu0 %2552
        %2554 = vrot.lane.b32.xlu0 %v2363, 16
        %v2555 = vpop.permute.xlu0 %2554
        %2556 = vrot.lane.b32.xlu0 %v2365, 16
        %v2557 = vpop.permute.xlu0 %2556
        %2558 = vrot.lane.b32.xlu0 %v2367, 16
        %v2559 = vpop.permute.xlu0 %2558
        %2560 = vrot.lane.b32.xlu0 %v2369, 16
        %v2561 = vpop.permute.xlu0 %2560
        %2562 = vrot.lane.b32.xlu0 %v2371, 16
        %v2563 = vpop.permute.xlu0 %2562
        %2564 = vrot.lane.b32.xlu0 %v2373, 16
        %v2565 = vpop.permute.xlu0 %2564
        %2566 = vrot.lane.b32.xlu0 %v2375, 16
        %v2567 = vpop.permute.xlu0 %2566
        %2568 = vrot.lane.b32.xlu0 %v2377, 16
        %v2569 = vpop.permute.xlu0 %2568
        %2570 = vrot.lane.b32.xlu0 %v2379, 16
        %v2571 = vpop.permute.xlu0 %2570
        %2572 = vrot.lane.b32.xlu0 %v2381, 16
        %v2573 = vpop.permute.xlu0 %2572
        %2574 = vrot.lane.b32.xlu0 %v2383, 16
        %v2575 = vpop.permute.xlu0 %2574
        %2576 = vrot.lane.b32.xlu0 %v2385, 16
        %v2577 = vpop.permute.xlu0 %2576
        %2578 = vrot.lane.b32.xlu0 %v2387, 16
        %v2579 = vpop.permute.xlu0 %2578
        %2580 = vrot.lane.b32.xlu0 %v2389, 16
        %v2581 = vpop.permute.xlu0 %2580
        %2582 = vrot.lane.b32.xlu0 %v2391, 16
        %v2583 = vpop.permute.xlu0 %2582
        %2584 = vrot.lane.b32.xlu0 %v2393, 16
        %v2585 = vpop.permute.xlu0 %2584
        %2586 = vrot.lane.b32.xlu0 %v2395, 16
        %v2587 = vpop.permute.xlu0 %2586
        %2588 = vrot.lane.b32.xlu0 %v2397, 16
        %v2589 = vpop.permute.xlu0 %2588
        %2590 = vrot.lane.b32.xlu0 %v2399, 16
        %v2591 = vpop.permute.xlu0 %2590
        %2592 = vrot.lane.b32.xlu0 %v2401, 16
        %v2593 = vpop.permute.xlu0 %2592
        %2594 = vrot.lane.b32.xlu0 %v2403, 16
        %v2595 = vpop.permute.xlu0 %2594
        %2596 = vrot.lane.b32.xlu0 %v2405, 16
        %v2597 = vpop.permute.xlu0 %2596
        %2598 = vrot.lane.b32.xlu0 %v2407, 16
        %v2599 = vpop.permute.xlu0 %2598
        %2600 = vrot.lane.b32.xlu0 %v2409, 16
        %v2601 = vpop.permute.xlu0 %2600
        %2602 = vrot.lane.b32.xlu0 %v2411, 16
        %v2603 = vpop.permute.xlu0 %2602
        %2604 = vrot.lane.b32.xlu0 %v2413, 16
        %v2605 = vpop.permute.xlu0 %2604
        %2606 = vrot.lane.b32.xlu0 %v2415, 16
        %v2607 = vpop.permute.xlu0 %2606
        %2608 = vrot.lane.b32.xlu0 %v2417, 16
        %v2609 = vpop.permute.xlu0 %2608
        %2610 = vrot.lane.b32.xlu0 %v2419, 16
        %v2611 = vpop.permute.xlu0 %2610
        %2612 = vrot.lane.b32.xlu0 %v2421, 16
        %v2613 = vpop.permute.xlu0 %2612
        %2614 = vrot.lane.b32.xlu0 %v2423, 16
        %v2615 = vpop.permute.xlu0 %2614
        %2616 = vrot.lane.b32.xlu0 %v2425, 16
        %v2617 = vpop.permute.xlu0 %2616
        %2682 = vrot.lane.b32.xlu0 %v2299, 32
        %v2683 = vpop.permute.xlu0 %2682
        %2684 = vrot.lane.b32.xlu0 %v2301, 32
        %v2685 = vpop.permute.xlu0 %2684
        %2686 = vrot.lane.b32.xlu0 %v2303, 32
        %v2687 = vpop.permute.xlu0 %2686
        %2688 = vrot.lane.b32.xlu0 %v2305, 32
        %v2689 = vpop.permute.xlu0 %2688
        %2690 = vrot.lane.b32.xlu0 %v2307, 32
        %v2691 = vpop.permute.xlu0 %2690
        %2692 = vrot.lane.b32.xlu0 %v2309, 32
        %v2693 = vpop.permute.xlu0 %2692
        %2694 = vrot.lane.b32.xlu0 %v2311, 32
        %v2695 = vpop.permute.xlu0 %2694
        %2696 = vrot.lane.b32.xlu0 %v2313, 32
        %v2697 = vpop.permute.xlu0 %2696
        %2698 = vrot.lane.b32.xlu0 %v2315, 32
        %v2699 = vpop.permute.xlu0 %2698
        %2700 = vrot.lane.b32.xlu0 %v2317, 32
        %v2701 = vpop.permute.xlu0 %2700
        %2702 = vrot.lane.b32.xlu0 %v2319, 32
        %v2703 = vpop.permute.xlu0 %2702
        %2704 = vrot.lane.b32.xlu0 %v2321, 32
        %v2705 = vpop.permute.xlu0 %2704
        %2706 = vrot.lane.b32.xlu0 %v2323, 32
        %v2707 = vpop.permute.xlu0 %2706
        %2708 = vrot.lane.b32.xlu0 %v2325, 32
        %v2709 = vpop.permute.xlu0 %2708
        %2710 = vrot.lane.b32.xlu0 %v2327, 32
        %v2711 = vpop.permute.xlu0 %2710
        %2712 = vrot.lane.b32.xlu0 %v2329, 32
        %v2713 = vpop.permute.xlu0 %2712
        %2714 = vrot.lane.b32.xlu0 %v2331, 32
        %v2715 = vpop.permute.xlu0 %2714
        %2716 = vrot.lane.b32.xlu0 %v2333, 32
        %v2717 = vpop.permute.xlu0 %2716
        %2718 = vrot.lane.b32.xlu0 %v2335, 32
        %v2719 = vpop.permute.xlu0 %2718
        %2720 = vrot.lane.b32.xlu0 %v2337, 32
        %v2721 = vpop.permute.xlu0 %2720
        %2722 = vrot.lane.b32.xlu0 %v2339, 32
        %v2723 = vpop.permute.xlu0 %2722
        %2724 = vrot.lane.b32.xlu0 %v2341, 32
        %v2725 = vpop.permute.xlu0 %2724
        %2726 = vrot.lane.b32.xlu0 %v2343, 32
        %v2727 = vpop.permute.xlu0 %2726
        %2728 = vrot.lane.b32.xlu0 %v2345, 32
        %v2729 = vpop.permute.xlu0 %2728
        %2730 = vrot.lane.b32.xlu0 %v2347, 32
        %v2731 = vpop.permute.xlu0 %2730
        %2732 = vrot.lane.b32.xlu0 %v2349, 32
        %v2733 = vpop.permute.xlu0 %2732
        %2734 = vrot.lane.b32.xlu0 %v2351, 32
        %v2735 = vpop.permute.xlu0 %2734
        %2736 = vrot.lane.b32.xlu0 %v2353, 32
        %v2737 = vpop.permute.xlu0 %2736
        %2738 = vrot.lane.b32.xlu0 %v2355, 32
        %v2739 = vpop.permute.xlu0 %2738
        %2740 = vrot.lane.b32.xlu0 %v2357, 32
        %v2741 = vpop.permute.xlu0 %2740
        %2742 = vrot.lane.b32.xlu0 %v2359, 32
        %v2743 = vpop.permute.xlu0 %2742
        %2744 = vrot.lane.b32.xlu0 %v2361, 32
        %v2745 = vpop.permute.xlu0 %2744
        %2746 = vrot.lane.b32.xlu0 %v2363, 32
        %v2747 = vpop.permute.xlu0 %2746
        %2748 = vrot.lane.b32.xlu0 %v2365, 32
        %v2749 = vpop.permute.xlu0 %2748
        %2750 = vrot.lane.b32.xlu0 %v2367, 32
        %v2751 = vpop.permute.xlu0 %2750
        %2752 = vrot.lane.b32.xlu0 %v2369, 32
        %v2753 = vpop.permute.xlu0 %2752
        %2754 = vrot.lane.b32.xlu0 %v2371, 32
        %v2755 = vpop.permute.xlu0 %2754
        %2756 = vrot.lane.b32.xlu0 %v2373, 32
        %v2757 = vpop.permute.xlu0 %2756
        %2758 = vrot.lane.b32.xlu0 %v2375, 32
        %v2759 = vpop.permute.xlu0 %2758
        %2760 = vrot.lane.b32.xlu0 %v2377, 32
        %v2761 = vpop.permute.xlu0 %2760
        %2762 = vrot.lane.b32.xlu0 %v2379, 32
        %v2763 = vpop.permute.xlu0 %2762
        %2764 = vrot.lane.b32.xlu0 %v2381, 32
        %v2765 = vpop.permute.xlu0 %2764
        %2766 = vrot.lane.b32.xlu0 %v2383, 32
        %v2767 = vpop.permute.xlu0 %2766
        %2768 = vrot.lane.b32.xlu0 %v2385, 32
        %v2769 = vpop.permute.xlu0 %2768
        %2770 = vrot.lane.b32.xlu0 %v2387, 32
        %v2771 = vpop.permute.xlu0 %2770
        %2772 = vrot.lane.b32.xlu0 %v2389, 32
        %v2773 = vpop.permute.xlu0 %2772
        %2774 = vrot.lane.b32.xlu0 %v2391, 32
        %v2775 = vpop.permute.xlu0 %2774
        %2776 = vrot.lane.b32.xlu0 %v2393, 32
        %v2777 = vpop.permute.xlu0 %2776
        %2778 = vrot.lane.b32.xlu0 %v2395, 32
        %v2779 = vpop.permute.xlu0 %2778
        %2780 = vrot.lane.b32.xlu0 %v2397, 32
        %v2781 = vpop.permute.xlu0 %2780
        %2782 = vrot.lane.b32.xlu0 %v2399, 32
        %v2783 = vpop.permute.xlu0 %2782
        %2784 = vrot.lane.b32.xlu0 %v2401, 32
        %v2785 = vpop.permute.xlu0 %2784
        %2786 = vrot.lane.b32.xlu0 %v2403, 32
        %v2787 = vpop.permute.xlu0 %2786
        %2788 = vrot.lane.b32.xlu0 %v2405, 32
        %v2789 = vpop.permute.xlu0 %2788
        %2790 = vrot.lane.b32.xlu0 %v2407, 32
        %v2791 = vpop.permute.xlu0 %2790
        %2792 = vrot.lane.b32.xlu0 %v2409, 32
        %v2793 = vpop.permute.xlu0 %2792
        %2794 = vrot.lane.b32.xlu0 %v2411, 32
        %v2795 = vpop.permute.xlu0 %2794
        %2796 = vrot.lane.b32.xlu0 %v2413, 32
        %v2797 = vpop.permute.xlu0 %2796
        %2798 = vrot.lane.b32.xlu0 %v2415, 32
        %v2799 = vpop.permute.xlu0 %2798
        %2800 = vrot.lane.b32.xlu0 %v2417, 32
        %v2801 = vpop.permute.xlu0 %2800
        %2802 = vrot.lane.b32.xlu0 %v2419, 32
        %v2803 = vpop.permute.xlu0 %2802
        %2804 = vrot.lane.b32.xlu0 %v2421, 32
        %v2805 = vpop.permute.xlu0 %2804
        %2806 = vrot.lane.b32.xlu0 %v2423, 32
        %v2807 = vpop.permute.xlu0 %2806
        %2808 = vrot.lane.b32.xlu0 %v2425, 32
        %v2809 = vpop.permute.xlu0 %2808
        %2874 = vrot.lane.b32.xlu0 %v2299, 48
        %v2875 = vpop.permute.xlu0 %2874
        %2876 = vrot.lane.b32.xlu0 %v2301, 48
        %v2877 = vpop.permute.xlu0 %2876
        %2878 = vrot.lane.b32.xlu0 %v2303, 48
        %v2879 = vpop.permute.xlu0 %2878
        %2880 = vrot.lane.b32.xlu0 %v2305, 48
        %v2881 = vpop.permute.xlu0 %2880
        %2882 = vrot.lane.b32.xlu0 %v2307, 48
        %v2883 = vpop.permute.xlu0 %2882
        %2884 = vrot.lane.b32.xlu0 %v2309, 48
        %v2885 = vpop.permute.xlu0 %2884
        %2886 = vrot.lane.b32.xlu0 %v2311, 48
        %v2887 = vpop.permute.xlu0 %2886
        %2888 = vrot.lane.b32.xlu0 %v2313, 48
        %v2889 = vpop.permute.xlu0 %2888
        %2890 = vrot.lane.b32.xlu0 %v2315, 48
        %v2891 = vpop.permute.xlu0 %2890
        %2892 = vrot.lane.b32.xlu0 %v2317, 48
        %v2893 = vpop.permute.xlu0 %2892
        %2894 = vrot.lane.b32.xlu0 %v2319, 48
        %v2895 = vpop.permute.xlu0 %2894
        %2896 = vrot.lane.b32.xlu0 %v2321, 48
        %v2897 = vpop.permute.xlu0 %2896
        %2898 = vrot.lane.b32.xlu0 %v2323, 48
        %v2899 = vpop.permute.xlu0 %2898
        %2900 = vrot.lane.b32.xlu0 %v2325, 48
        %v2901 = vpop.permute.xlu0 %2900
        %2902 = vrot.lane.b32.xlu0 %v2327, 48
        %v2903 = vpop.permute.xlu0 %2902
        %2904 = vrot.lane.b32.xlu0 %v2329, 48
        %v2905 = vpop.permute.xlu0 %2904
        %2906 = vrot.lane.b32.xlu0 %v2331, 48
        %v2907 = vpop.permute.xlu0 %2906
        %2908 = vrot.lane.b32.xlu0 %v2333, 48
        %v2909 = vpop.permute.xlu0 %2908
        %2910 = vrot.lane.b32.xlu0 %v2335, 48
        %v2911 = vpop.permute.xlu0 %2910
        %2912 = vrot.lane.b32.xlu0 %v2337, 48
        %v2913 = vpop.permute.xlu0 %2912
        %2914 = vrot.lane.b32.xlu0 %v2339, 48
        %v2915 = vpop.permute.xlu0 %2914
        %2916 = vrot.lane.b32.xlu0 %v2341, 48
        %v2917 = vpop.permute.xlu0 %2916
        %2918 = vrot.lane.b32.xlu0 %v2343, 48
        %v2919 = vpop.permute.xlu0 %2918
        %2920 = vrot.lane.b32.xlu0 %v2345, 48
        %v2921 = vpop.permute.xlu0 %2920
        %2922 = vrot.lane.b32.xlu0 %v2347, 48
        %v2923 = vpop.permute.xlu0 %2922
        %2924 = vrot.lane.b32.xlu0 %v2349, 48
        %v2925 = vpop.permute.xlu0 %2924
        %2926 = vrot.lane.b32.xlu0 %v2351, 48
        %v2927 = vpop.permute.xlu0 %2926
        %2928 = vrot.lane.b32.xlu0 %v2353, 48
        %v2929 = vpop.permute.xlu0 %2928
        %2930 = vrot.lane.b32.xlu0 %v2355, 48
        %v2931 = vpop.permute.xlu0 %2930
        %2932 = vrot.lane.b32.xlu0 %v2357, 48
        %v2933 = vpop.permute.xlu0 %2932
        %2934 = vrot.lane.b32.xlu0 %v2359, 48
        %v2935 = vpop.permute.xlu0 %2934
        %2936 = vrot.lane.b32.xlu0 %v2361, 48
        %v2937 = vpop.permute.xlu0 %2936
        %2938 = vrot.lane.b32.xlu0 %v2363, 48
        %v2939 = vpop.permute.xlu0 %2938
        %2940 = vrot.lane.b32.xlu0 %v2365, 48
        %v2941 = vpop.permute.xlu0 %2940
        %2942 = vrot.lane.b32.xlu0 %v2367, 48
        %v2943 = vpop.permute.xlu0 %2942
        %2944 = vrot.lane.b32.xlu0 %v2369, 48
        %v2945 = vpop.permute.xlu0 %2944
        %2946 = vrot.lane.b32.xlu0 %v2371, 48
        %v2947 = vpop.permute.xlu0 %2946
        %2948 = vrot.lane.b32.xlu0 %v2373, 48
        %v2949 = vpop.permute.xlu0 %2948
        %2950 = vrot.lane.b32.xlu0 %v2375, 48
        %v2951 = vpop.permute.xlu0 %2950
        %2952 = vrot.lane.b32.xlu0 %v2377, 48
        %v2953 = vpop.permute.xlu0 %2952
        %2954 = vrot.lane.b32.xlu0 %v2379, 48
        %v2955 = vpop.permute.xlu0 %2954
        %2956 = vrot.lane.b32.xlu0 %v2381, 48
        %v2957 = vpop.permute.xlu0 %2956
        %2958 = vrot.lane.b32.xlu0 %v2383, 48
        %v2959 = vpop.permute.xlu0 %2958
        %2960 = vrot.lane.b32.xlu0 %v2385, 48
        %v2961 = vpop.permute.xlu0 %2960
        %2962 = vrot.lane.b32.xlu0 %v2387, 48
        %v2963 = vpop.permute.xlu0 %2962
        %2964 = vrot.lane.b32.xlu0 %v2389, 48
        %v2965 = vpop.permute.xlu0 %2964
        %2966 = vrot.lane.b32.xlu0 %v2391, 48
        %v2967 = vpop.permute.xlu0 %2966
        %2968 = vrot.lane.b32.xlu0 %v2393, 48
        %v2969 = vpop.permute.xlu0 %2968
        %2970 = vrot.lane.b32.xlu0 %v2395, 48
        %v2971 = vpop.permute.xlu0 %2970
        %2972 = vrot.lane.b32.xlu0 %v2397, 48
        %v2973 = vpop.permute.xlu0 %2972
        %2974 = vrot.lane.b32.xlu0 %v2399, 48
        %v2975 = vpop.permute.xlu0 %2974
        %2976 = vrot.lane.b32.xlu0 %v2401, 48
        %v2977 = vpop.permute.xlu0 %2976
        %2978 = vrot.lane.b32.xlu0 %v2403, 48
        %v2979 = vpop.permute.xlu0 %2978
        %2980 = vrot.lane.b32.xlu0 %v2405, 48
        %v2981 = vpop.permute.xlu0 %2980
        %2982 = vrot.lane.b32.xlu0 %v2407, 48
        %v2983 = vpop.permute.xlu0 %2982
        %2984 = vrot.lane.b32.xlu0 %v2409, 48
        %v2985 = vpop.permute.xlu0 %2984
        %2986 = vrot.lane.b32.xlu0 %v2411, 48
        %v2987 = vpop.permute.xlu0 %2986
        %2988 = vrot.lane.b32.xlu0 %v2413, 48
        %v2989 = vpop.permute.xlu0 %2988
        %2990 = vrot.lane.b32.xlu0 %v2415, 48
        %v2991 = vpop.permute.xlu0 %2990
        %2992 = vrot.lane.b32.xlu0 %v2417, 48
        %v2993 = vpop.permute.xlu0 %2992
        %2994 = vrot.lane.b32.xlu0 %v2419, 48
        %v2995 = vpop.permute.xlu0 %2994
        %2996 = vrot.lane.b32.xlu0 %v2421, 48
        %v2997 = vpop.permute.xlu0 %2996
        %2998 = vrot.lane.b32.xlu0 %v2423, 48
        %v2999 = vpop.permute.xlu0 %2998
        %3000 = vrot.lane.b32.xlu0 %v2425, 48
        %v3001 = vpop.permute.xlu0 %3000
        %vm3066 = vcmask 130048
        %v3067 = vsel %vm3066, %v2299, %v2491
        %v3068 = vsel %vm3066, %v2301, %v2493
        %v3069 = vsel %vm3066, %v2303, %v2495
        %v3070 = vsel %vm3066, %v2305, %v2497
        %v3071 = vsel %vm3066, %v2307, %v2499
        %v3072 = vsel %vm3066, %v2309, %v2501
        %v3073 = vsel %vm3066, %v2311, %v2503
        %v3074 = vsel %vm3066, %v2313, %v2505
        %v3075 = vsel %vm3066, %v2315, %v2507
        %v3076 = vsel %vm3066, %v2317, %v2509
        %v3077 = vsel %vm3066, %v2319, %v2511
        %v3078 = vsel %vm3066, %v2321, %v2513
        %v3079 = vsel %vm3066, %v2323, %v2515
        %v3080 = vsel %vm3066, %v2325, %v2517
        %v3081 = vsel %vm3066, %v2327, %v2519
        %v3082 = vsel %vm3066, %v2329, %v2521
        %v3083 = vsel %vm3066, %v2331, %v2523
        %v3084 = vsel %vm3066, %v2333, %v2525
        %v3085 = vsel %vm3066, %v2335, %v2527
        %v3086 = vsel %vm3066, %v2337, %v2529
        %v3087 = vsel %vm3066, %v2339, %v2531
        %v3088 = vsel %vm3066, %v2341, %v2533
        %v3089 = vsel %vm3066, %v2343, %v2535
        %v3090 = vsel %vm3066, %v2345, %v2537
        %v3091 = vsel %vm3066, %v2347, %v2539
        %v3092 = vsel %vm3066, %v2349, %v2541
        %v3093 = vsel %vm3066, %v2351, %v2543
        %v3094 = vsel %vm3066, %v2353, %v2545
        %v3095 = vsel %vm3066, %v2355, %v2547
        %v3096 = vsel %vm3066, %v2357, %v2549
        %v3097 = vsel %vm3066, %v2359, %v2551
        %v3098 = vsel %vm3066, %v2361, %v2553
        %v3099 = vsel %vm3066, %v2363, %v2555
        %v3100 = vsel %vm3066, %v2365, %v2557
        %v3101 = vsel %vm3066, %v2367, %v2559
        %v3102 = vsel %vm3066, %v2369, %v2561
        %v3103 = vsel %vm3066, %v2371, %v2563
        %v3104 = vsel %vm3066, %v2373, %v2565
        %v3105 = vsel %vm3066, %v2375, %v2567
        %v3106 = vsel %vm3066, %v2377, %v2569
        %v3107 = vsel %vm3066, %v2379, %v2571
        %v3108 = vsel %vm3066, %v2381, %v2573
        %v3109 = vsel %vm3066, %v2383, %v2575
        %v3110 = vsel %vm3066, %v2385, %v2577
        %v3111 = vsel %vm3066, %v2387, %v2579
        %v3112 = vsel %vm3066, %v2389, %v2581
        %v3113 = vsel %vm3066, %v2391, %v2583
        %v3114 = vsel %vm3066, %v2393, %v2585
        %v3115 = vsel %vm3066, %v2395, %v2587
        %v3116 = vsel %vm3066, %v2397, %v2589
        %v3117 = vsel %vm3066, %v2399, %v2591
        %v3118 = vsel %vm3066, %v2401, %v2593
        %v3119 = vsel %vm3066, %v2403, %v2595
        %v3120 = vsel %vm3066, %v2405, %v2597
        %v3121 = vsel %vm3066, %v2407, %v2599
        %v3122 = vsel %vm3066, %v2409, %v2601
        %v3123 = vsel %vm3066, %v2411, %v2603
        %v3124 = vsel %vm3066, %v2413, %v2605
        %v3125 = vsel %vm3066, %v2415, %v2607
        %v3126 = vsel %vm3066, %v2417, %v2609
        %v3127 = vsel %vm3066, %v2419, %v2611
        %v3128 = vsel %vm3066, %v2421, %v2613
        %v3129 = vsel %vm3066, %v2423, %v2615
        %v3130 = vsel %vm3066, %v2425, %v2617
        %vm3131 = vcmask 261120
        %v3132 = vsel %vm3131, %v3067, %v2683
        %v3133 = vsel %vm3131, %v3068, %v2685
        %v3134 = vsel %vm3131, %v3069, %v2687
        %v3135 = vsel %vm3131, %v3070, %v2689
        %v3136 = vsel %vm3131, %v3071, %v2691
        %v3137 = vsel %vm3131, %v3072, %v2693
        %v3138 = vsel %vm3131, %v3073, %v2695
        %v3139 = vsel %vm3131, %v3074, %v2697
        %v3140 = vsel %vm3131, %v3075, %v2699
        %v3141 = vsel %vm3131, %v3076, %v2701
        %v3142 = vsel %vm3131, %v3077, %v2703
        %v3143 = vsel %vm3131, %v3078, %v2705
        %v3144 = vsel %vm3131, %v3079, %v2707
        %v3145 = vsel %vm3131, %v3080, %v2709
        %v3146 = vsel %vm3131, %v3081, %v2711
        %v3147 = vsel %vm3131, %v3082, %v2713
        %v3148 = vsel %vm3131, %v3083, %v2715
        %v3149 = vsel %vm3131, %v3084, %v2717
        %v3150 = vsel %vm3131, %v3085, %v2719
        %v3151 = vsel %vm3131, %v3086, %v2721
        %v3152 = vsel %vm3131, %v3087, %v2723
        %v3153 = vsel %vm3131, %v3088, %v2725
        %v3154 = vsel %vm3131, %v3089, %v2727
        %v3155 = vsel %vm3131, %v3090, %v2729
        %v3156 = vsel %vm3131, %v3091, %v2731
        %v3157 = vsel %vm3131, %v3092, %v2733
        %v3158 = vsel %vm3131, %v3093, %v2735
        %v3159 = vsel %vm3131, %v3094, %v2737
        %v3160 = vsel %vm3131, %v3095, %v2739
        %v3161 = vsel %vm3131, %v3096, %v2741
        %v3162 = vsel %vm3131, %v3097, %v2743
        %v3163 = vsel %vm3131, %v3098, %v2745
        %v3164 = vsel %vm3131, %v3099, %v2747
        %v3165 = vsel %vm3131, %v3100, %v2749
        %v3166 = vsel %vm3131, %v3101, %v2751
        %v3167 = vsel %vm3131, %v3102, %v2753
        %v3168 = vsel %vm3131, %v3103, %v2755
        %v3169 = vsel %vm3131, %v3104, %v2757
        %v3170 = vsel %vm3131, %v3105, %v2759
        %v3171 = vsel %vm3131, %v3106, %v2761
        %v3172 = vsel %vm3131, %v3107, %v2763
        %v3173 = vsel %vm3131, %v3108, %v2765
        %v3174 = vsel %vm3131, %v3109, %v2767
        %v3175 = vsel %vm3131, %v3110, %v2769
        %v3176 = vsel %vm3131, %v3111, %v2771
        %v3177 = vsel %vm3131, %v3112, %v2773
        %v3178 = vsel %vm3131, %v3113, %v2775
        %v3179 = vsel %vm3131, %v3114, %v2777
        %v3180 = vsel %vm3131, %v3115, %v2779
        %v3181 = vsel %vm3131, %v3116, %v2781
        %v3182 = vsel %vm3131, %v3117, %v2783
        %v3183 = vsel %vm3131, %v3118, %v2785
        %v3184 = vsel %vm3131, %v3119, %v2787
        %v3185 = vsel %vm3131, %v3120, %v2789
        %v3186 = vsel %vm3131, %v3121, %v2791
        %v3187 = vsel %vm3131, %v3122, %v2793
        %v3188 = vsel %vm3131, %v3123, %v2795
        %v3189 = vsel %vm3131, %v3124, %v2797
        %v3190 = vsel %vm3131, %v3125, %v2799
        %v3191 = vsel %vm3131, %v3126, %v2801
        %v3192 = vsel %vm3131, %v3127, %v2803
        %v3193 = vsel %vm3131, %v3128, %v2805
        %v3194 = vsel %vm3131, %v3129, %v2807
        %v3195 = vsel %vm3131, %v3130, %v2809
        %vm3196 = vcmask 392192
        %v3197 = vsel %vm3196, %v3132, %v2875
        %v3198 = vsel %vm3196, %v3133, %v2877
        %v3199 = vsel %vm3196, %v3134, %v2879
        %v3200 = vsel %vm3196, %v3135, %v2881
        %v3201 = vsel %vm3196, %v3136, %v2883
        %v3202 = vsel %vm3196, %v3137, %v2885
        %v3203 = vsel %vm3196, %v3138, %v2887
        %v3204 = vsel %vm3196, %v3139, %v2889
        %v3205 = vsel %vm3196, %v3140, %v2891
        %v3206 = vsel %vm3196, %v3141, %v2893
        %v3207 = vsel %vm3196, %v3142, %v2895
        %v3208 = vsel %vm3196, %v3143, %v2897
        %v3209 = vsel %vm3196, %v3144, %v2899
        %v3210 = vsel %vm3196, %v3145, %v2901
        %v3211 = vsel %vm3196, %v3146, %v2903
        %v3212 = vsel %vm3196, %v3147, %v2905
        %v3213 = vsel %vm3196, %v3148, %v2907
        %v3214 = vsel %vm3196, %v3149, %v2909
        %v3215 = vsel %vm3196, %v3150, %v2911
        %v3216 = vsel %vm3196, %v3151, %v2913
        %v3217 = vsel %vm3196, %v3152, %v2915
        %v3218 = vsel %vm3196, %v3153, %v2917
        %v3219 = vsel %vm3196, %v3154, %v2919
        %v3220 = vsel %vm3196, %v3155, %v2921
        %v3221 = vsel %vm3196, %v3156, %v2923
        %v3222 = vsel %vm3196, %v3157, %v2925
        %v3223 = vsel %vm3196, %v3158, %v2927
        %v3224 = vsel %vm3196, %v3159, %v2929
        %v3225 = vsel %vm3196, %v3160, %v2931
        %v3226 = vsel %vm3196, %v3161, %v2933
        %v3227 = vsel %vm3196, %v3162, %v2935
        %v3228 = vsel %vm3196, %v3163, %v2937
        %v3229 = vsel %vm3196, %v3164, %v2939
        %v3230 = vsel %vm3196, %v3165, %v2941
        %v3231 = vsel %vm3196, %v3166, %v2943
        %v3232 = vsel %vm3196, %v3167, %v2945
        %v3233 = vsel %vm3196, %v3168, %v2947
        %v3234 = vsel %vm3196, %v3169, %v2949
        %v3235 = vsel %vm3196, %v3170, %v2951
        %v3236 = vsel %vm3196, %v3171, %v2953
        %v3237 = vsel %vm3196, %v3172, %v2955
        %v3238 = vsel %vm3196, %v3173, %v2957
        %v3239 = vsel %vm3196, %v3174, %v2959
        %v3240 = vsel %vm3196, %v3175, %v2961
        %v3241 = vsel %vm3196, %v3176, %v2963
        %v3242 = vsel %vm3196, %v3177, %v2965
        %v3243 = vsel %vm3196, %v3178, %v2967
        %v3244 = vsel %vm3196, %v3179, %v2969
        %v3245 = vsel %vm3196, %v3180, %v2971
        %v3246 = vsel %vm3196, %v3181, %v2973
        %v3247 = vsel %vm3196, %v3182, %v2975
        %v3248 = vsel %vm3196, %v3183, %v2977
        %v3249 = vsel %vm3196, %v3184, %v2979
        %v3250 = vsel %vm3196, %v3185, %v2981
        %v3251 = vsel %vm3196, %v3186, %v2983
        %v3252 = vsel %vm3196, %v3187, %v2985
        %v3253 = vsel %vm3196, %v3188, %v2987
        %v3254 = vsel %vm3196, %v3189, %v2989
        %v3255 = vsel %vm3196, %v3190, %v2991
        %v3256 = vsel %vm3196, %v3191, %v2993
        %v3257 = vsel %vm3196, %v3192, %v2995
        %v3258 = vsel %vm3196, %v3193, %v2997
        %v3259 = vsel %vm3196, %v3194, %v2999
        %v3260 = vsel %vm3196, %v3195, %v3001
        %v3261 = vmul.f32 %v284, %v3197
        %v3262 = vmul.f32 %v285, %v3198
        %v3263 = vmul.f32 %v286, %v3199
        %v3264 = vmul.f32 %v287, %v3200
        %v3265 = vmul.f32 %v288, %v3201
        %v3266 = vmul.f32 %v289, %v3202
        %v3267 = vmul.f32 %v290, %v3203
        %v3268 = vmul.f32 %v291, %v3204
        %v3269 = vmul.f32 %v292, %v3205
        %v3270 = vmul.f32 %v293, %v3206
        %v3271 = vmul.f32 %v294, %v3207
        %v3272 = vmul.f32 %v295, %v3208
        %v3273 = vmul.f32 %v296, %v3209
        %v3274 = vmul.f32 %v297, %v3210
        %v3275 = vmul.f32 %v298, %v3211
        %v3276 = vmul.f32 %v299, %v3212
        %v3277 = vmul.f32 %v300, %v3213
        %v3278 = vmul.f32 %v301, %v3214
        %v3279 = vmul.f32 %v302, %v3215
        %v3280 = vmul.f32 %v303, %v3216
        %v3281 = vmul.f32 %v304, %v3217
        %v3282 = vmul.f32 %v305, %v3218
        %v3283 = vmul.f32 %v306, %v3219
        %v3284 = vmul.f32 %v307, %v3220
        %v3285 = vmul.f32 %v308, %v3221
        %v3286 = vmul.f32 %v309, %v3222
        %v3287 = vmul.f32 %v310, %v3223
        %v3288 = vmul.f32 %v311, %v3224
        %v3289 = vmul.f32 %v312, %v3225
        %v3290 = vmul.f32 %v313, %v3226
        %v3291 = vmul.f32 %v314, %v3227
        %v3292 = vmul.f32 %v315, %v3228
        %v3293 = vmul.f32 %v316, %v3229
        %v3294 = vmul.f32 %v317, %v3230
        %v3295 = vmul.f32 %v318, %v3231
        %v3296 = vmul.f32 %v319, %v3232
        %v3297 = vmul.f32 %v320, %v3233
        %v3298 = vmul.f32 %v321, %v3234
        %v3299 = vmul.f32 %v322, %v3235
        %v3300 = vmul.f32 %v323, %v3236
        %v3301 = vmul.f32 %v324, %v3237
        %v3302 = vmul.f32 %v325, %v3238
        %v3303 = vmul.f32 %v326, %v3239
        %v3304 = vmul.f32 %v327, %v3240
        %v3305 = vmul.f32 %v328, %v3241
        %v3306 = vmul.f32 %v329, %v3242
        %v3307 = vmul.f32 %v330, %v3243
        %v3308 = vmul.f32 %v331, %v3244
        %v3309 = vmul.f32 %v332, %v3245
        %v3310 = vmul.f32 %v333, %v3246
        %v3311 = vmul.f32 %v334, %v3247
        %v3312 = vmul.f32 %v335, %v3248
        %v3313 = vmul.f32 %v336, %v3249
        %v3314 = vmul.f32 %v337, %v3250
        %v3315 = vmul.f32 %v338, %v3251
        %v3316 = vmul.f32 %v339, %v3252
        %v3317 = vmul.f32 %v340, %v3253
        %v3318 = vmul.f32 %v341, %v3254
        %v3319 = vmul.f32 %v342, %v3255
        %v3320 = vmul.f32 %v343, %v3256
        %v3321 = vmul.f32 %v344, %v3257
        %v3322 = vmul.f32 %v345, %v3258
        %v3323 = vmul.f32 %v346, %v3259
        %v3324 = vmul.f32 %v347, %v3260
        %v3325 = vld [vmem:[%s242] sm:$0xf]
        %v3326 = vlaneseq
        %v3327 = vshrl.u32 %v3326, 7
        %v3328 = vadd.s32 %v3327, 8
        %v3329 = vlaneseq
        %v3330 = vshrl.u32 %v3329, 7
        %v3331 = vsub.s32 0, %v3330
        %v3332 = vrot.slane %v3325, %v3331
        %v3333 = vlaneseq
        %v3334 = vshrl.u32 %v3333, 7
        %v3335 = vsub.s32 1, %v3334
        %v3336 = vrot.slane %v3325, %v3335
        %v3337 = vlaneseq
        %v3338 = vshrl.u32 %v3337, 7
        %v3339 = vsub.s32 2, %v3338
        %v3340 = vrot.slane %v3325, %v3339
        %v3341 = vlaneseq
        %v3342 = vshrl.u32 %v3341, 7
        %v3343 = vsub.s32 3, %v3342
        %v3344 = vrot.slane %v3325, %v3343
        %vm3345 = vcmp.eq.s32.totalorder %v3327, %v3332
        %vm3346 = vcmp.eq.s32.totalorder %v3327, %v3336
        %vm3347 = vcmp.eq.s32.totalorder %v3327, %v3340
        %vm3348 = vcmp.eq.s32.totalorder %v3327, %v3344
        %vm3349 = vcmp.eq.s32.totalorder %v3328, %v3332
        %vm3350 = vcmp.eq.s32.totalorder %v3328, %v3336
        %vm3351 = vcmp.eq.s32.totalorder %v3328, %v3340
        %vm3352 = vcmp.eq.s32.totalorder %v3328, %v3344
        %v3353 = vsel %vm3345, 1, 0
        %v3354 = vsel %vm3346, 1, 0
        %v3355 = vsel %vm3347, 1, 0
        %v3356 = vsel %vm3348, 1, 0
        %v3357 = vsel %vm3349, 1, 0
        %v3358 = vsel %vm3350, 1, 0
        %v3359 = vsel %vm3351, 1, 0
        %v3360 = vsel %vm3352, 1, 0
        %v3361 = vcvt.s32.f32 %v3353
        %v3362 = vcvt.s32.f32 %v3354
        %v3363 = vcvt.s32.f32 %v3355
        %v3364 = vcvt.s32.f32 %v3356
        %v3365 = vcvt.s32.f32 %v3357
        %v3366 = vcvt.s32.f32 %v3358
        %v3367 = vcvt.s32.f32 %v3359
        %v3368 = vcvt.s32.f32 %v3360
        %v3369 = vld [vmem:[%s271] sm:$0xff]
        %v3370 = vld [vmem:[%s271 + $0x8] sm:$0xff]
        %3371 = vmatprep.subr.mxu0 0.0
        %3372 = vmatpush1.msra.mxu0 %v3261
        %3373 = vmatprep.subr.mxu0 0.0
        %3374 = vmatpush1.msra.mxu0 %v3262
        %3375 = vmatprep.subr.mxu0 0.0
        %3376 = vmatpush1.msra.mxu0 %v3263
        %3377 = vmatprep.subr.mxu0 0.0
        %3378 = vmatpush1.msra.mxu0 %v3264
        %3379 = vmatprep.subr.mxu0 0.0
        %3380 = vmatpush1.msra.mxu0 %v3265
        %3381 = vmatprep.subr.mxu0 0.0
        %3382 = vmatpush1.msra.mxu0 %v3266
        %3383 = vmatprep.subr.mxu0 0.0
        %3384 = vmatpush1.msra.mxu0 %v3267
        %3385 = vmatprep.subr.mxu0 0.0
        %3386 = vmatpush1.msra.mxu0 %v3268
        %3387 = vmatprep.subr.mxu0 0.0
        %3388 = vmatpush1.msra.mxu0 %v3269
        %3389 = vmatprep.subr.mxu0 0.0
        %3390 = vmatpush1.msra.mxu0 %v3270
        %3391 = vmatprep.subr.mxu0 0.0
        %3392 = vmatpush1.msra.mxu0 %v3271
        %3393 = vmatprep.subr.mxu0 0.0
        %3394 = vmatpush1.msra.mxu0 %v3272
        %3395 = vmatprep.subr.mxu0 0.0
        %3396 = vmatpush1.msra.mxu0 %v3273
        %3397 = vmatprep.subr.mxu0 0.0
        %3398 = vmatpush1.msra.mxu0 %v3274
        %3399 = vmatprep.subr.mxu0 0.0
        %3400 = vmatpush1.msra.mxu0 %v3275
        %3401 = vmatprep.subr.mxu0 0.0
        %3402 = vmatpush1.msra.mxu0 %v3276
        %3403 = vmatprep.subr.mxu0 0.0
        %3404 = vmatpush1.msra.mxu0 %v3277
        %3405 = vmatprep.subr.mxu0 0.0
        %3406 = vmatpush1.msra.mxu0 %v3278
        %3407 = vmatprep.subr.mxu0 0.0
        %3408 = vmatpush1.msra.mxu0 %v3279
        %3409 = vmatprep.subr.mxu0 0.0
        %3410 = vmatpush1.msra.mxu0 %v3280
        %3411 = vmatprep.subr.mxu0 0.0
        %3412 = vmatpush1.msra.mxu0 %v3281
        %3413 = vmatprep.subr.mxu0 0.0
        %3414 = vmatpush1.msra.mxu0 %v3282
        %3415 = vmatprep.subr.mxu0 0.0
        %3416 = vmatpush1.msra.mxu0 %v3283
        %3417 = vmatprep.subr.mxu0 0.0
        %3418 = vmatpush1.msra.mxu0 %v3284
        %3419 = vmatprep.subr.mxu0 0.0
        %3420 = vmatpush1.msra.mxu0 %v3285
        %3421 = vmatprep.subr.mxu0 0.0
        %3422 = vmatpush1.msra.mxu0 %v3286
        %3423 = vmatprep.subr.mxu0 0.0
        %3424 = vmatpush1.msra.mxu0 %v3287
        %3425 = vmatprep.subr.mxu0 0.0
        %3426 = vmatpush1.msra.mxu0 %v3288
        %3427 = vmatprep.subr.mxu0 0.0
        %3428 = vmatpush1.msra.mxu0 %v3289
        %3429 = vmatprep.subr.mxu0 0.0
        %3430 = vmatpush1.msra.mxu0 %v3290
        %3431 = vmatprep.subr.mxu0 0.0
        %3432 = vmatpush1.msra.mxu0 %v3291
        %3433 = vmatprep.subr.mxu0 0.0
        %3434 = vmatpush1.msra.mxu0 %v3292
        %3435 = vmatprep.mubr.f32.mxu0 %v3362
        %3436 = vmatmul.mubr.f32.gmra.mrb[0].mxu0 %v3361
        %v3437 = vpop.f32.mrb[0].mxu0
        %v3438 = vadd.f32 0.0, %v3437
        %v3439 = vpop.f32.mrb[0].mxu0
        %3440 = vmatprep.mubr.f32.mxu0 %v3366
        %3441 = vmatmul.mubr.f32.gmra.mrb[0].mxu0 %v3365
        %v3442 = vpop.f32.mrb[0].mxu0
        %v3443 = vadd.f32 0.0, %v3442
        %v3444 = vpop.f32.mrb[0].mxu0
        %3445 = vdwg.mxu0
        %3446 = vmatprep.subr.mxu0 0.0
        %3447 = vmatpush1.msra.mxu0 %v3293
        %3448 = vmatprep.subr.mxu0 0.0
        %3449 = vmatpush1.msra.mxu0 %v3294
        %3450 = vmatprep.subr.mxu0 0.0
        %3451 = vmatpush1.msra.mxu0 %v3295
        %3452 = vmatprep.subr.mxu0 0.0
        %3453 = vmatpush1.msra.mxu0 %v3296
        %3454 = vmatprep.subr.mxu0 0.0
        %3455 = vmatpush1.msra.mxu0 %v3297
        %3456 = vmatprep.subr.mxu0 0.0
        %3457 = vmatpush1.msra.mxu0 %v3298
        %3458 = vmatprep.subr.mxu0 0.0
        %3459 = vmatpush1.msra.mxu0 %v3299
        %3460 = vmatprep.subr.mxu0 0.0
        %3461 = vmatpush1.msra.mxu0 %v3300
        %3462 = vmatprep.subr.mxu0 0.0
        %3463 = vmatpush1.msra.mxu0 %v3301
        %3464 = vmatprep.subr.mxu0 0.0
        %3465 = vmatpush1.msra.mxu0 %v3302
        %3466 = vmatprep.subr.mxu0 0.0
        %3467 = vmatpush1.msra.mxu0 %v3303
        %3468 = vmatprep.subr.mxu0 0.0
        %3469 = vmatpush1.msra.mxu0 %v3304
        %3470 = vmatprep.subr.mxu0 0.0
        %3471 = vmatpush1.msra.mxu0 %v3305
        %3472 = vmatprep.subr.mxu0 0.0
        %3473 = vmatpush1.msra.mxu0 %v3306
        %3474 = vmatprep.subr.mxu0 0.0
        %3475 = vmatpush1.msra.mxu0 %v3307
        %3476 = vmatprep.subr.mxu0 0.0
        %3477 = vmatpush1.msra.mxu0 %v3308
        %3478 = vmatprep.subr.mxu0 0.0
        %3479 = vmatpush1.msra.mxu0 %v3309
        %3480 = vmatprep.subr.mxu0 0.0
        %3481 = vmatpush1.msra.mxu0 %v3310
        %3482 = vmatprep.subr.mxu0 0.0
        %3483 = vmatpush1.msra.mxu0 %v3311
        %3484 = vmatprep.subr.mxu0 0.0
        %3485 = vmatpush1.msra.mxu0 %v3312
        %3486 = vmatprep.subr.mxu0 0.0
        %3487 = vmatpush1.msra.mxu0 %v3313
        %3488 = vmatprep.subr.mxu0 0.0
        %3489 = vmatpush1.msra.mxu0 %v3314
        %3490 = vmatprep.subr.mxu0 0.0
        %3491 = vmatpush1.msra.mxu0 %v3315
        %3492 = vmatprep.subr.mxu0 0.0
        %3493 = vmatpush1.msra.mxu0 %v3316
        %3494 = vmatprep.subr.mxu0 0.0
        %3495 = vmatpush1.msra.mxu0 %v3317
        %3496 = vmatprep.subr.mxu0 0.0
        %3497 = vmatpush1.msra.mxu0 %v3318
        %3498 = vmatprep.subr.mxu0 0.0
        %3499 = vmatpush1.msra.mxu0 %v3319
        %3500 = vmatprep.subr.mxu0 0.0
        %3501 = vmatpush1.msra.mxu0 %v3320
        %3502 = vmatprep.subr.mxu0 0.0
        %3503 = vmatpush1.msra.mxu0 %v3321
        %3504 = vmatprep.subr.mxu0 0.0
        %3505 = vmatpush1.msra.mxu0 %v3322
        %3506 = vmatprep.subr.mxu0 0.0
        %3507 = vmatpush1.msra.mxu0 %v3323
        %3508 = vmatprep.subr.mxu0 0.0
        %3509 = vmatpush1.msra.mxu0 %v3324
        %3510 = vmatprep.mubr.f32.mxu0 %v3364
        %3511 = vmatmul.mubr.f32.gmra.mrb[0].mxu0 %v3363
        %v3512 = vpop.f32.mrb[0].mxu0
        %v3513 = vadd.f32 %v3438, %v3512
        %v3514 = vpop.f32.mrb[0].mxu0
        %3515 = vmatprep.mubr.f32.mxu0 %v3368
        %3516 = vmatmul.mubr.f32.gmra.mrb[0].mxu0 %v3367
        %v3517 = vpop.f32.mrb[0].mxu0
        %v3518 = vadd.f32 %v3443, %v3517
        %v3519 = vpop.f32.mrb[0].mxu0
        %3520 = vdwg.mxu0
        %v3521 = vadd.f32 %v3369, %v3513
        %v3522 = vadd.f32 %v3370, %v3518
        %vm3523 = vcmask 523264
        %3524 = vst.msk [vmem:[%s271] sm:$0xff] %vm3523, %v3521
        %3525 = vst.msk [vmem:[%s271 + $0x8] sm:$0xff] %vm3523, %v3522
        %s3526 = sand.u32 %s142, 1
        %s3527 = scalar_lea.sflag [#allocation4], %s3526
        %s3528 = sand.u32 %s142, 1
        %s3529 = smul.addr %s3528, 16
        %s3530 = scalar_lea.vmem [#allocation7], %s3529
        // Predicated region
        $region49: #{tpu_custom_call.1} parent=35 // pred_check
          %p3531 = pneg %p152
        $region50: #{tpu_custom_call.1} parent=35 // pred_check_branch
          %3533 = sbr.rel (%p3531) target = $region52
        $region51: #{tpu_custom_call.1} parent=35 // pred_region
          %s3534 = smul.u32 2, %s28
          %s3536 = ssub.s32 256, 256
          %3537 = vsyncadd %s3527, %s3536
          %s3538 = smul.addr %s3534, 128
          %s3539 = scalar_lea.hbm %s4, %s3538
          %s3540 = sshll.u32 %s3530, 4
          %s3541 = int_to_ptr.vmem [resolvable:$true] %s3540
          %3546 = dma.vmem_to_hbm [thread:$0]  %s3541, 256, %s3539, %s3527, 128, 128, 8
        $region52: #{tpu_custom_call.1} parent=35 // pred_fallthru
          _
      $region36: #{tpu_custom_call.1} parent=5 // pred_fallthru
        _
      %p3547 = scmp.le.s32.totalorder 2, %s19
      // Predicated region
      $region53: #{tpu_custom_call.1} parent=5 // pred_check
        %p3548 = pneg %p3547
      $region54: #{tpu_custom_call.1} parent=5 // pred_check_branch
        %3550 = sbr.rel (%p3548) target = $region56
      $region55: #{tpu_custom_call.1} parent=5 // pred_region
        %s3551 = ssub.s32 %s19, 2
        // Predicated region
        $region57: #{tpu_custom_call.1} parent=55 // pred_check
          %p3552 = pneg %p158
        $region58: #{tpu_custom_call.1} parent=55 // pred_check_branch
          %3554 = sbr.rel (%p3552) target = $region60
        $region59: #{tpu_custom_call.1} parent=55 // pred_region
          %s3555 = sand.u32 %s143, 1
          %s3556 = scalar_lea.sflag [#allocation4], %s3555
          %s3557 = sand.u32 %s143, 1
          %s3558 = smul.addr %s3557, 16
          %s3559 = scalar_lea.vmem [#allocation7], %s3558
          %3560 = dma.done %s3556, 256
        $region60: #{tpu_custom_call.1} parent=55 // pred_fallthru
          _
      $region56: #{tpu_custom_call.1} parent=5 // pred_fallthru
        _
    $region6: #{tpu_custom_call.1} parent=1 // loop_footer
      %s23 = sadd.s32 1, %s19
    $region7: #{tpu_custom_call.1} parent=1 // loop_footer_branch
      %18 = sbr.rel target = $region3
    $region8: #{tpu_custom_call.1} parent=1 // loop_exit
      _
    %3561 = vsyncpa [#allocation3], 1
    %s3562 = scalar_lea.sflag [#allocation3], 1
    %3563 = vsyncpa %s3562, 1
    %3564 = vsyncpa [#allocation6], 1
    %s3565 = scalar_lea.sflag [#allocation6], 1
    %3566 = vsyncpa %s3565, 1
    %3567 = vsyncpa [#allocation4], 1
    %s3568 = scalar_lea.sflag [#allocation4], 1
    %3569 = vsyncpa %s3568, 1

</llo_original>
